<compile_context>
chip_gen: v6e
topology: v6e:2x2x1
jax: 0.10.0
libtpu: 0.0.40
codegen_flags: <defaults>
</compile_context>

<pallas_src>
import jax
import jax.numpy as jnp
from jax.experimental import pallas as pl
from jax.experimental.pallas import tpu as pltpu

STATE_DIM = 24  # BipedalWalker-v3 observation_space.shape[0]


def _cdiv(a, b):
    return -(-a // b)


def _round_up(n, m):
    return _cdiv(n, m) * m


def critic_kernel(x_ref,
                  w1_ref, b1_ref,
                  w2_ref, b2_ref,
                  w3_ref, b3_ref,
                  w4_ref, b4_ref,
                  o_ref):
    tm = x_ref.shape[0]
    half = tm // 2                      # tm is always a multiple of 16

    # Hoist the small broadcast operands out of the unrolled loop.
    b1 = b1_ref[...]
    b2 = b2_ref[...]
    b3 = b3_ref[...]
    w4 = w4_ref[...]
    b4 = b4_ref[0, 0]

    # Two independent half-tile chains: the bias/ReLU/bf16-pack epilogue of
    # one half overlaps the next half's MXU work.
    for c in range(2):
        rows = pl.ds(c * half, half)

        x = x_ref[rows, :]                                                  # bf16 (half, 24)
        h = jnp.dot(x, w1_ref[...], preferred_element_type=jnp.float32)    # (half, 512)
        h = jnp.maximum(h + b1, 0.0)                                        # f32 bias/ReLU

        h = jnp.dot(h.astype(jnp.bfloat16), w2_ref[...],
                    preferred_element_type=jnp.float32)                     # (half, 256)
        h = jnp.maximum(h + b2, 0.0)

        h = jnp.dot(h.astype(jnp.bfloat16), w3_ref[...],
                    preferred_element_type=jnp.float32)                     # (half, 128)
        h = jnp.maximum(h + b3, 0.0)

        # Final Linear(128 -> 1) on the VPU/XLU (N=1 MXU matmul would waste
        # nearly all MXU columns): multiply by the (1, 128) weight row and
        # reduce over the lane axis.
        v = jnp.sum(h * w4, axis=-1, keepdims=True)                         # (half, 1)
        o_ref[rows, :] = v + b4


def critic_forward(x, params):
    """x: (B, state_dim) float32. params: dict with w1..w4, b1..b4 (f32)."""
    B, D = x.shape

    # Tile selection:
    #   * tiny batches: one tile, rounded up to a multiple of 16 (so the
    #     kernel's two half-chunks stay sublane-aligned).
    #   * otherwise: an even number (>= 2) of programs so v7x can shard the
    #     batch axis across both TensorCores, capped at TM=1024 rows/tile
    #     (~6 MB of intermediates, safe under v5e's 16 MiB scoped VMEM).
    b16 = _round_up(max(B, 1), 16)
    if B <= 64:
        n_tiles, tm = 1, b16
    else:
        n_tiles = _round_up(_cdiv(b16, 1024), 2)    # even, >= 2
        tm = _round_up(_cdiv(b16, n_tiles), 16)
    b_pad = n_tiles * tm

    # Pre-cast x to bf16 (MXU operand) and zero-pad ragged batches.
    x_p = x.astype(jnp.bfloat16)
    if b_pad != B:
        x_p = jnp.pad(x_p, ((0, b_pad - B), (0, 0)))

    # bf16 weights for the MXU; biases and the fc4 row stay f32 (VPU math).
    w1 = params["w1"].astype(jnp.bfloat16)
    w2 = params["w2"].astype(jnp.bfloat16)
    w3 = params["w3"].astype(jnp.bfloat16)
    b1 = params["b1"].astype(jnp.float32)
    b2 = params["b2"].astype(jnp.float32)
    b3 = params["b3"].astype(jnp.float32)
    w4 = params["w4"].reshape(1, -1).astype(jnp.float32)   # (128,1) -> (1,128) row
    b4 = params["b4"].reshape(1, 1).astype(jnp.float32)    # scalar -> SMEM

    def resident(shape):
        # Weight/bias stays VMEM-resident with a constant block index.
        return pl.BlockSpec(shape, lambda i: (0, 0))

    flops = 2 * b_pad * (D * 512 + 512 * 256 + 256 * 128 + 128 * 1)
    bytes_accessed = (
        x_p.size * 2                                        # bf16 activations in
        + (w1.size + w2.size + w3.size) * 2                 # bf16 weights
        + (b1.size + b2.size + b3.size + w4.size + b4.size) * 4
        + b_pad * 4                                         # f32 output
    )

    out = pl.pallas_call(
        critic_kernel,
        out_shape=jax.ShapeDtypeStruct((b_pad, 1), jnp.float32),
        grid=(n_tiles,),
        in_specs=[
            pl.BlockSpec((tm, D), lambda i: (i, 0)),        # x: tiled over rows
            resident(w1.shape), resident(b1.shape),
            resident(w2.shape), resident(b2.shape),
            resident(w3.shape), resident(b3.shape),
            resident(w4.shape),
            pl.BlockSpec(memory_space=pltpu.MemorySpace.SMEM),  # b4 scalar
        ],
        out_specs=pl.BlockSpec((tm, 1), lambda i: (i, 0)),
        compiler_params=pltpu.CompilerParams(
            dimension_semantics=("parallel",),               # v7x: rows over 2 TCs
        ),
        cost_estimate=pl.CostEstimate(
            flops=flops, transcendentals=0, bytes_accessed=bytes_accessed),
    )(x_p, w1, b1, w2, b2, w3, b3, w4, b4)

    return out[:B]


def init_params(key, state_dim=STATE_DIM):
    """Mimic init.normal_(mean=0, std=1) on every weight & bias."""
    dims = [(state_dim, 512), (512, 256), (256, 128), (128, 1)]
    params = {}
    for i, (d_in, d_out) in enumerate(dims, start=1):
        key, kw, kb = jax.random.split(key, 3)
        # PyTorch weight is (out, in); we store (in, out) for y = x @ W + b.
        params[f"w{i}"] = jax.random.normal(kw, (d_in, d_out), dtype=jnp.float32)
        params[f"b{i}"] = jax.random.normal(kb, (1, d_out), dtype=jnp.float32)
    return params


def reference_forward(x, params):
    """Pure-JAX reference with the same bf16-weight / f32-accumulate numerics."""
    w1 = params["w1"].astype(jnp.bfloat16)
    w2 = params["w2"].astype(jnp.bfloat16)
    w3 = params["w3"].astype(jnp.bfloat16)
    h = jnp.dot(x.astype(jnp.bfloat16), w1, preferred_element_type=jnp.float32)
    h = jnp.maximum(h + params["b1"], 0.0)
    h = jnp.dot(h.astype(jnp.bfloat16), w2, preferred_element_type=jnp.float32)
    h = jnp.maximum(h + params["b2"], 0.0)
    h = jnp.dot(h.astype(jnp.bfloat16), w3, preferred_element_type=jnp.float32)
    h = jnp.maximum(h + params["b3"], 0.0)
    return h @ params["w4"] + params["b4"]   # final layer in f32, like the kernel


if __name__ == "__main__":
    key = jax.random.PRNGKey(0)
    key, kp = jax.random.split(key)
    params = init_params(kp)

    # Tiny single-tile batch plus a ragged multi-tile batch to exercise the
    # grid (>= 2 programs), padding, and the resident-weight specs.
    for batch in (8, 300):
        key, kx = jax.random.split(key)
        x = jax.random.normal(kx, (batch, STATE_DIM), dtype=jnp.float32)

        out = jax.block_until_ready(critic_forward(x, params))
        ref = reference_forward(x, params)

        assert out.shape == (batch, 1), out.shape
        assert jnp.allclose(out, ref, rtol=5e-3, atol=1e-2), (
            "max abs diff", float(jnp.max(jnp.abs(out - ref))))

    print("KERNEL_OK")
</pallas_src>

<mosaic_0001>
module attributes {stable_mosaic.version = 11 : i64} {
  func.func @critic_kernel(%arg0: i32, %arg1: memref<16x24xbf16, #tpu.memory_space<vmem>>, %arg2: memref<24x512xbf16, #tpu.memory_space<vmem>>, %arg3: memref<1x512xf32, #tpu.memory_space<vmem>>, %arg4: memref<512x256xbf16, #tpu.memory_space<vmem>>, %arg5: memref<1x256xf32, #tpu.memory_space<vmem>>, %arg6: memref<256x128xbf16, #tpu.memory_space<vmem>>, %arg7: memref<1x128xf32, #tpu.memory_space<vmem>>, %arg8: memref<1x128xf32, #tpu.memory_space<vmem>>, %arg9: memref<1x1xf32, #tpu.memory_space<smem>>, %arg10: memref<16x1xf32, #tpu.memory_space<vmem>>) attributes {dimension_semantics = [#tpu.dimension_semantics<parallel>], iteration_bounds = array<i64: 1>, scalar_prefetch = 0 : i64, scratch_operands = 0 : i64, tpu.core_type = #tpu.core_type<tc>, window_params = [{transform_indices = @transform_0, window_bounds = array<i64: 16, 24>}, {pipeline_mode = #tpu.pipeline_mode<synchronous>, transform_indices = @transform_1, window_bounds = array<i64: 24, 512>}, {pipeline_mode = #tpu.pipeline_mode<synchronous>, transform_indices = @transform_2, window_bounds = array<i64: 1, 512>}, {pipeline_mode = #tpu.pipeline_mode<synchronous>, transform_indices = @transform_3, window_bounds = array<i64: 512, 256>}, {pipeline_mode = #tpu.pipeline_mode<synchronous>, transform_indices = @transform_4, window_bounds = array<i64: 1, 256>}, {pipeline_mode = #tpu.pipeline_mode<synchronous>, transform_indices = @transform_5, window_bounds = array<i64: 256, 128>}, {pipeline_mode = #tpu.pipeline_mode<synchronous>, transform_indices = @transform_6, window_bounds = array<i64: 1, 128>}, {pipeline_mode = #tpu.pipeline_mode<synchronous>, transform_indices = @transform_7, window_bounds = array<i64: 1, 128>}, {transform_indices = @transform_8, window_bounds = array<i64: 1, 1>}, {transform_indices = @transform_9, window_bounds = array<i64: 16, 1>}]} {
    %c0 = arith.constant 0 : index
    %c0_0 = arith.constant 0 : index
    %0 = vector.load %arg3[%c0, %c0_0] : memref<1x512xf32, #tpu.memory_space<vmem>>, vector<1x512xf32>
    %c0_1 = arith.constant 0 : index
    %c0_2 = arith.constant 0 : index
    %1 = vector.load %arg5[%c0_1, %c0_2] : memref<1x256xf32, #tpu.memory_space<vmem>>, vector<1x256xf32>
    %c0_3 = arith.constant 0 : index
    %c0_4 = arith.constant 0 : index
    %2 = vector.load %arg7[%c0_3, %c0_4] : memref<1x128xf32, #tpu.memory_space<vmem>>, vector<1x128xf32>
    %c0_5 = arith.constant 0 : index
    %c0_6 = arith.constant 0 : index
    %3 = vector.load %arg8[%c0_5, %c0_6] : memref<1x128xf32, #tpu.memory_space<vmem>>, vector<1x128xf32>
    %c0_7 = arith.constant 0 : index
    %c0_8 = arith.constant 0 : index
    %4 = memref.load %arg9[%c0_7, %c0_8] : memref<1x1xf32, #tpu.memory_space<smem>>
    %c0_9 = arith.constant 0 : index
    %c0_10 = arith.constant 0 : index
    %5 = vector.load %arg1[%c0_9, %c0_10] : memref<16x24xbf16, #tpu.memory_space<vmem>>, vector<8x24xbf16>
    %c0_11 = arith.constant 0 : index
    %c0_12 = arith.constant 0 : index
    %6 = vector.load %arg2[%c0_11, %c0_12] : memref<24x512xbf16, #tpu.memory_space<vmem>>, vector<24x512xbf16>
    %cst = arith.constant dense<0.000000e+00> : vector<8x512xf32>
    %7 = tpu.matmul %5, %6, %cst {dimension_numbers = #tpu.dot_dimension_numbers<[1], [0], [0], [1], [0, 0, 1, 1], [], []>} : vector<8x24xbf16>, vector<24x512xbf16>, vector<8x512xf32> -> vector<8x512xf32>
    %8 = vector.broadcast %0 : vector<1x512xf32> to vector<8x512xf32>
    %9 = arith.addf %7, %8 : vector<8x512xf32>
    %cst_13 = arith.constant 0.000000e+00 : f32
    %10 = vector.broadcast %cst_13 : f32 to vector<8x512xf32>
    %11 = arith.maximumf %9, %10 : vector<8x512xf32>
    %12 = arith.truncf %11 : vector<8x512xf32> to vector<8x512xbf16>
    %c0_14 = arith.constant 0 : index
    %c0_15 = arith.constant 0 : index
    %13 = vector.load %arg4[%c0_14, %c0_15] : memref<512x256xbf16, #tpu.memory_space<vmem>>, vector<512x256xbf16>
    %cst_16 = arith.constant dense<0.000000e+00> : vector<8x256xf32>
    %14 = tpu.matmul %12, %13, %cst_16 {dimension_numbers = #tpu.dot_dimension_numbers<[1], [0], [0], [1], [0, 0, 1, 1], [], []>} : vector<8x512xbf16>, vector<512x256xbf16>, vector<8x256xf32> -> vector<8x256xf32>
    %15 = vector.broadcast %1 : vector<1x256xf32> to vector<8x256xf32>
    %16 = arith.addf %14, %15 : vector<8x256xf32>
    %cst_17 = arith.constant 0.000000e+00 : f32
    %17 = vector.broadcast %cst_17 : f32 to vector<8x256xf32>
    %18 = arith.maximumf %16, %17 : vector<8x256xf32>
    %19 = arith.truncf %18 : vector<8x256xf32> to vector<8x256xbf16>
    %c0_18 = arith.constant 0 : index
    %c0_19 = arith.constant 0 : index
    %20 = vector.load %arg6[%c0_18, %c0_19] : memref<256x128xbf16, #tpu.memory_space<vmem>>, vector<256x128xbf16>
    %cst_20 = arith.constant dense<0.000000e+00> : vector<8x128xf32>
    %21 = tpu.matmul %19, %20, %cst_20 {dimension_numbers = #tpu.dot_dimension_numbers<[1], [0], [0], [1], [0, 0, 1, 1], [], []>} : vector<8x256xbf16>, vector<256x128xbf16>, vector<8x128xf32> -> vector<8x128xf32>
    %22 = vector.broadcast %2 : vector<1x128xf32> to vector<8x128xf32>
    %23 = arith.addf %21, %22 : vector<8x128xf32>
    %cst_21 = arith.constant 0.000000e+00 : f32
    %24 = vector.broadcast %cst_21 : f32 to vector<8x128xf32>
    %25 = arith.maximumf %23, %24 : vector<8x128xf32>
    %26 = vector.broadcast %3 : vector<1x128xf32> to vector<8x128xf32>
    %27 = arith.mulf %25, %26 : vector<8x128xf32>
    %cst_22 = arith.constant dense<0.000000e+00> : vector<8xf32>
    %28 = vector.multi_reduction <add>, %27, %cst_22 [1] : vector<8x128xf32> to vector<8xf32>
    %29 = vector.shape_cast %28 : vector<8xf32> to vector<8x1xf32>
    %30 = vector.broadcast %4 : f32 to vector<8x1xf32>
    %31 = arith.addf %29, %30 : vector<8x1xf32>
    %c0_23 = arith.constant 0 : index
    %c0_24 = arith.constant 0 : index
    %32 = vector.load %arg10[%c0_23, %c0_24] : memref<16x1xf32, #tpu.memory_space<vmem>>, vector<8x1xf32>
    tpu.vector_store %arg10[%c0_23, %c0_24], %31 {strides = array<i32>} : memref<16x1xf32, #tpu.memory_space<vmem>>, vector<8x1xf32>,
    %c8 = arith.constant 8 : index
    %c0_25 = arith.constant 0 : index
    %33 = vector.load %arg1[%c8, %c0_25] : memref<16x24xbf16, #tpu.memory_space<vmem>>, vector<8x24xbf16>
    %c0_26 = arith.constant 0 : index
    %c0_27 = arith.constant 0 : index
    %34 = vector.load %arg2[%c0_26, %c0_27] : memref<24x512xbf16, #tpu.memory_space<vmem>>, vector<24x512xbf16>
    %cst_28 = arith.constant dense<0.000000e+00> : vector<8x512xf32>
    %35 = tpu.matmul %33, %34, %cst_28 {dimension_numbers = #tpu.dot_dimension_numbers<[1], [0], [0], [1], [0, 0, 1, 1], [], []>} : vector<8x24xbf16>, vector<24x512xbf16>, vector<8x512xf32> -> vector<8x512xf32>
    %36 = vector.broadcast %0 : vector<1x512xf32> to vector<8x512xf32>
    %37 = arith.addf %35, %36 : vector<8x512xf32>
    %cst_29 = arith.constant 0.000000e+00 : f32
    %38 = vector.broadcast %cst_29 : f32 to vector<8x512xf32>
    %39 = arith.maximumf %37, %38 : vector<8x512xf32>
    %40 = arith.truncf %39 : vector<8x512xf32> to vector<8x512xbf16>
    %c0_30 = arith.constant 0 : index
    %c0_31 = arith.constant 0 : index
    %41 = vector.load %arg4[%c0_30, %c0_31] : memref<512x256xbf16, #tpu.memory_space<vmem>>, vector<512x256xbf16>
    %cst_32 = arith.constant dense<0.000000e+00> : vector<8x256xf32>
    %42 = tpu.matmul %40, %41, %cst_32 {dimension_numbers = #tpu.dot_dimension_numbers<[1], [0], [0], [1], [0, 0, 1, 1], [], []>} : vector<8x512xbf16>, vector<512x256xbf16>, vector<8x256xf32> -> vector<8x256xf32>
    %43 = vector.broadcast %1 : vector<1x256xf32> to vector<8x256xf32>
    %44 = arith.addf %42, %43 : vector<8x256xf32>
    %cst_33 = arith.constant 0.000000e+00 : f32
    %45 = vector.broadcast %cst_33 : f32 to vector<8x256xf32>
    %46 = arith.maximumf %44, %45 : vector<8x256xf32>
    %47 = arith.truncf %46 : vector<8x256xf32> to vector<8x256xbf16>
    %c0_34 = arith.constant 0 : index
    %c0_35 = arith.constant 0 : index
    %48 = vector.load %arg6[%c0_34, %c0_35] : memref<256x128xbf16, #tpu.memory_space<vmem>>, vector<256x128xbf16>
    %cst_36 = arith.constant dense<0.000000e+00> : vector<8x128xf32>
    %49 = tpu.matmul %47, %48, %cst_36 {dimension_numbers = #tpu.dot_dimension_numbers<[1], [0], [0], [1], [0, 0, 1, 1], [], []>} : vector<8x256xbf16>, vector<256x128xbf16>, vector<8x128xf32> -> vector<8x128xf32>
    %50 = vector.broadcast %2 : vector<1x128xf32> to vector<8x128xf32>
    %51 = arith.addf %49, %50 : vector<8x128xf32>
    %cst_37 = arith.constant 0.000000e+00 : f32
    %52 = vector.broadcast %cst_37 : f32 to vector<8x128xf32>
    %53 = arith.maximumf %51, %52 : vector<8x128xf32>
    %54 = vector.broadcast %3 : vector<1x128xf32> to vector<8x128xf32>
    %55 = arith.mulf %53, %54 : vector<8x128xf32>
    %cst_38 = arith.constant dense<0.000000e+00> : vector<8xf32>
    %56 = vector.multi_reduction <add>, %55, %cst_38 [1] : vector<8x128xf32> to vector<8xf32>
    %57 = vector.shape_cast %56 : vector<8xf32> to vector<8x1xf32>
    %58 = vector.broadcast %4 : f32 to vector<8x1xf32>
    %59 = arith.addf %57, %58 : vector<8x1xf32>
    %c8_39 = arith.constant 8 : index
    %c0_40 = arith.constant 0 : index
    %60 = vector.load %arg10[%c8_39, %c0_40] : memref<16x1xf32, #tpu.memory_space<vmem>>, vector<8x1xf32>
    tpu.vector_store %arg10[%c8_39, %c0_40], %59 {strides = array<i32>} : memref<16x1xf32, #tpu.memory_space<vmem>>, vector<8x1xf32>,
    return
  }
  func.func @transform_0(%arg0: i32) -> (i32, i32) {
    %c0_i32 = arith.constant 0 : i32
    %c0_i32_0 = arith.constant 0 : i32
    return %arg0, %c0_i32 : i32, i32
  }
  func.func @transform_1(%arg0: i32) -> (i32, i32) {
    %c0_i32 = arith.constant 0 : i32
    %c0_i32_0 = arith.constant 0 : i32
    %c0_i32_1 = arith.constant 0 : i32
    return %c0_i32, %c0_i32_0 : i32, i32
  }
  func.func @transform_2(%arg0: i32) -> (i32, i32) {
    %c0_i32 = arith.constant 0 : i32
    %c0_i32_0 = arith.constant 0 : i32
    %c0_i32_1 = arith.constant 0 : i32
    return %c0_i32, %c0_i32_0 : i32, i32
  }
  func.func @transform_3(%arg0: i32) -> (i32, i32) {
    %c0_i32 = arith.constant 0 : i32
    %c0_i32_0 = arith.constant 0 : i32
    %c0_i32_1 = arith.constant 0 : i32
    return %c0_i32, %c0_i32_0 : i32, i32
  }
  func.func @transform_4(%arg0: i32) -> (i32, i32) {
    %c0_i32 = arith.constant 0 : i32
    %c0_i32_0 = arith.constant 0 : i32
    %c0_i32_1 = arith.constant 0 : i32
    return %c0_i32, %c0_i32_0 : i32, i32
  }
  func.func @transform_5(%arg0: i32) -> (i32, i32) {
    %c0_i32 = arith.constant 0 : i32
    %c0_i32_0 = arith.constant 0 : i32
    %c0_i32_1 = arith.constant 0 : i32
    return %c0_i32, %c0_i32_0 : i32, i32
  }
  func.func @transform_6(%arg0: i32) -> (i32, i32) {
    %c0_i32 = arith.constant 0 : i32
    %c0_i32_0 = arith.constant 0 : i32
    %c0_i32_1 = arith.constant 0 : i32
    return %c0_i32, %c0_i32_0 : i32, i32
  }
  func.func @transform_7(%arg0: i32) -> (i32, i32) {
    %c0_i32 = arith.constant 0 : i32
    %c0_i32_0 = arith.constant 0 : i32
    %c0_i32_1 = arith.constant 0 : i32
    return %c0_i32, %c0_i32_0 : i32, i32
  }
  func.func @transform_8(%arg0: i32) -> (i32, i32) {
    %c0_i32 = arith.constant 0 : i32
    %c0_i32_0 = arith.constant 0 : i32
    %c0_i32_1 = arith.constant 0 : i32
    return %c0_i32, %c0_i32_0 : i32, i32
  }
  func.func @transform_9(%arg0: i32) -> (i32, i32) {
    %c0_i32 = arith.constant 0 : i32
    %c0_i32_0 = arith.constant 0 : i32
    return %arg0, %c0_i32 : i32, i32
  }
}

</mosaic_0001>

<llo_original>
// kernel: tpu_custom_call.1
$region0: #{tpu_custom_call.1}
  #allocation0 [shape = 'u32[]', space=smem, size = 0x4, offset = 0x4, fixed_abs, tag = 'smem constant byte address 0x4 - core index']
  #allocation1 [shape = 'u32[144,128]{1,0:T(1,128)}', space=vmem, size = 0x12000, scoped, tag = 'internal scratch']
  #allocation2 [shape = 'f32[1,1]{1,0:T(1,128)S(6)}', space=smem, size = 0x200, scoped, tag = 'scoped memory for tpu_custom_call.1']
  %s0 = inlined_call_operand.hbm [shape: bf16[16,24], index: 0, kind: input, shape index: {}]
  %s1 = inlined_call_operand.hbm [shape: bf16[24,512], index: 1, kind: input, shape index: {}]
  %s2 = inlined_call_operand.vmem [shape: f32[1,512], index: 2, kind: input, shape index: {}]
  %s3 = inlined_call_operand.hbm [shape: bf16[512,256], index: 3, kind: input, shape index: {}]
  %s4 = inlined_call_operand.vmem [shape: f32[1,256], index: 4, kind: input, shape index: {}]
  %s5 = inlined_call_operand.hbm [shape: bf16[256,128], index: 5, kind: input, shape index: {}]
  %s6 = inlined_call_operand.vmem [shape: f32[1,128], index: 6, kind: input, shape index: {}]
  %s7 = inlined_call_operand.vmem [shape: f32[1,128], index: 7, kind: input, shape index: {}]
  %s8 = inlined_call_operand.<no memory space> [shape: f32[1,1], index: 8, kind: input, shape index: {}]
  %s9 = inlined_call_operand.vmem [shape: f32[16,1], index: 9, kind: output, shape index: {}]
  %s10 = sld [smem:[#allocation0]]
  $region62: #{tpu_custom_call.1} parent=0
    _
  %s12 = ssub.s32 1, %s10
  %s13 = scalar_select 0, %s12, %s10
  %14 = sst [smem:[#allocation2]] %s8
  $region1: #{tpu_custom_call.1} parent=0
    #allocation3 [shape = 'u8[4096]{0}', space=vmem, size = 0x1000, scoped, tag = 'input window, operand 0, single buffered']
    #allocation4 [shape = 's32[1]{0}', space=sflag, size = 0x4, scoped, tag = 'scoped memory for tpu_custom_call.1']
    #allocation5 [shape = 'u8[24576]{0}', space=vmem, size = 0x6000, scoped, tag = 'input window, operand 1, single buffered']
    #allocation6 [shape = 's32[1]{0}', space=sflag, size = 0x4, scoped, tag = 'scoped memory for tpu_custom_call.1']
    #allocation7 [shape = 'u8[262144]{0}', space=vmem, size = 0x40000, scoped, tag = 'input window, operand 3, single buffered']
    #allocation8 [shape = 'u8[65536]{0}', space=vmem, size = 0x10000, scoped, tag = 'input window, operand 5, single buffered']
    #allocation9 [shape = 's32[1]{0}', space=sflag, size = 0x4, scoped, tag = 'scoped memory for tpu_custom_call.1']
    %15 = vsyncpa [#allocation4], 0
    %16 = vsyncpa [#allocation6], 0
    %17 = vsyncpa [#allocation9], 0
    // Predicated region
    $region2: #{tpu_custom_call.1} parent=1 // pred_check
      _
    $region3: #{tpu_custom_call.1} parent=1 // pred_check_branch
      %19 = sbr.rel (0) target = $region5
    $region4: #{tpu_custom_call.1} parent=1 // pred_region
      %s21 = ssub.s32 128, 128
      %22 = vsyncadd [#allocation4], %s21
      %s23 = sshll.u32 [#allocation3], 4
      %s24 = int_to_ptr.vmem [resolvable:$true] %s23
      %29 = dma.hbm_to_vmem [thread:$0]  %s0, 128, %s24, [#allocation4], 64, 64, 4
    $region5: #{tpu_custom_call.1} parent=1 // pred_fallthru
      _
    // Predicated region
    $region6: #{tpu_custom_call.1} parent=1 // pred_check
      _
    $region7: #{tpu_custom_call.1} parent=1 // pred_check_branch
      %31 = sbr.rel (0) target = $region9
    $region8: #{tpu_custom_call.1} parent=1 // pred_region
      %s33 = ssub.s32 768, 768
      %34 = vsyncadd [#allocation6], %s33
      %s35 = sshll.u32 [#allocation5], 4
      %s36 = int_to_ptr.vmem [resolvable:$true] %s35
      %41 = dma.hbm_to_vmem [thread:$0]  %s1, 768, %s36, [#allocation6], 256, 256, 16
    $region9: #{tpu_custom_call.1} parent=1 // pred_fallthru
      _
    // Predicated region
    $region10: #{tpu_custom_call.1} parent=1 // pred_check
      _
    $region11: #{tpu_custom_call.1} parent=1 // pred_check_branch
      %43 = sbr.rel (0) target = $region13
    $region12: #{tpu_custom_call.1} parent=1 // pred_region
      _
    $region13: #{tpu_custom_call.1} parent=1 // pred_fallthru
      _
    // Predicated region
    $region14: #{tpu_custom_call.1} parent=1 // pred_check
      _
    $region15: #{tpu_custom_call.1} parent=1 // pred_check_branch
      %45 = sbr.rel (0) target = $region17
    $region16: #{tpu_custom_call.1} parent=1 // pred_region
      %s47 = ssub.s32 8192, 8192
      %48 = vsyncadd [#allocation6], %s47
      %s49 = sshll.u32 [#allocation7], 4
      %s50 = int_to_ptr.vmem [resolvable:$true] %s49
      %55 = dma.hbm_to_vmem [thread:$0]  %s3, 8192, %s50, [#allocation6], 128, 128, 8
    $region17: #{tpu_custom_call.1} parent=1 // pred_fallthru
      _
    // Predicated region
    $region18: #{tpu_custom_call.1} parent=1 // pred_check
      _
    $region19: #{tpu_custom_call.1} parent=1 // pred_check_branch
      %57 = sbr.rel (0) target = $region21
    $region20: #{tpu_custom_call.1} parent=1 // pred_region
      _
    $region21: #{tpu_custom_call.1} parent=1 // pred_fallthru
      _
    // Predicated region
    $region22: #{tpu_custom_call.1} parent=1 // pred_check
      _
    $region23: #{tpu_custom_call.1} parent=1 // pred_check_branch
      %59 = sbr.rel (0) target = $region25
    $region24: #{tpu_custom_call.1} parent=1 // pred_region
      %s61 = ssub.s32 2048, 2048
      %62 = vsyncadd [#allocation9], %s61
      %s63 = sshll.u32 [#allocation8], 4
      %s64 = int_to_ptr.vmem [resolvable:$true] %s63
      %69 = dma.hbm_to_vmem [thread:$0]  %s5, 2048, %s64, [#allocation9], 64, 64, 4
    $region25: #{tpu_custom_call.1} parent=1 // pred_fallthru
      _
    // Predicated region
    $region26: #{tpu_custom_call.1} parent=1 // pred_check
      _
    $region27: #{tpu_custom_call.1} parent=1 // pred_check_branch
      %71 = sbr.rel (0) target = $region29
    $region28: #{tpu_custom_call.1} parent=1 // pred_region
      _
    $region29: #{tpu_custom_call.1} parent=1 // pred_fallthru
      _
    // Predicated region
    $region30: #{tpu_custom_call.1} parent=1 // pred_check
      _
    $region31: #{tpu_custom_call.1} parent=1 // pred_check_branch
      %73 = sbr.rel (0) target = $region33
    $region32: #{tpu_custom_call.1} parent=1 // pred_region
      _
    $region33: #{tpu_custom_call.1} parent=1 // pred_fallthru
      _
    // Predicated region
    $region34: #{tpu_custom_call.1} parent=1 // pred_check
      _
    $region35: #{tpu_custom_call.1} parent=1 // pred_check_branch
      %75 = sbr.rel (0) target = $region37
    $region36: #{tpu_custom_call.1} parent=1 // pred_region
      _
    $region37: #{tpu_custom_call.1} parent=1 // pred_fallthru
      _
    // Predicated region
    $region38: #{tpu_custom_call.1} parent=1 // pred_check
      _
    $region39: #{tpu_custom_call.1} parent=1 // pred_check_branch
      %77 = sbr.rel (0) target = $region41
    $region40: #{tpu_custom_call.1} parent=1 // pred_region
      %78 = dma.done [#allocation4], 128
    $region41: #{tpu_custom_call.1} parent=1 // pred_fallthru
      _
    // Predicated region
    $region42: #{tpu_custom_call.1} parent=1 // pred_check
      _
    $region43: #{tpu_custom_call.1} parent=1 // pred_check_branch
      %80 = sbr.rel (0) target = $region45
    $region44: #{tpu_custom_call.1} parent=1 // pred_region
      %81 = dma.done [#allocation6], 768
    $region45: #{tpu_custom_call.1} parent=1 // pred_fallthru
      _
    // Predicated region
    $region46: #{tpu_custom_call.1} parent=1 // pred_check
      _
    $region47: #{tpu_custom_call.1} parent=1 // pred_check_branch
      %83 = sbr.rel (0) target = $region49
    $region48: #{tpu_custom_call.1} parent=1 // pred_region
      %84 = dma.done [#allocation6], 8192
    $region49: #{tpu_custom_call.1} parent=1 // pred_fallthru
      _
    // Predicated region
    $region50: #{tpu_custom_call.1} parent=1 // pred_check
      _
    $region51: #{tpu_custom_call.1} parent=1 // pred_check_branch
      %86 = sbr.rel (0) target = $region53
    $region52: #{tpu_custom_call.1} parent=1 // pred_region
      %87 = dma.done [#allocation9], 2048
    $region53: #{tpu_custom_call.1} parent=1 // pred_fallthru
      _
    %v89 = vld [vmem:[%s2] sm:$0xf]
    %v90 = vld [vmem:[%s4] sm:$0x3]
    %v91 = vld [vmem:[%s6] sm:$0x1]
    %v92 = vld [vmem:[%s7] sm:$0x1]
    %s93 = sld [smem:[#allocation2]]
    %v94 = vld [vmem:[#allocation3] sm:$0xf]
    %v95 = vld [vmem:[#allocation5] sm:$0xff]
    %v96 = vld [vmem:[#allocation5 + $0x8] sm:$0xff]
    %v97 = vld [vmem:[#allocation5 + $0x10] sm:$0xff]
    %v98 = vld [vmem:[#allocation5 + $0x18] sm:$0xff]
    %v99 = vld [vmem:[#allocation5 + $0x20] sm:$0xff]
    %v100 = vld [vmem:[#allocation5 + $0x28] sm:$0xff]
    %v102 = vlaneseq
    %v103 = vshrl.u32 %v102, 7
    %v104 = vsub.s32 0, %v103
    %v105 = vrot.slane %v89, %v104
    %v106 = vlaneseq
    %v107 = vshrl.u32 %v106, 7
    %v108 = vsub.s32 1, %v107
    %v109 = vrot.slane %v89, %v108
    %v110 = vlaneseq
    %v111 = vshrl.u32 %v110, 7
    %v112 = vsub.s32 2, %v111
    %v113 = vrot.slane %v89, %v112
    %v114 = vlaneseq
    %v115 = vshrl.u32 %v114, 7
    %v116 = vsub.s32 3, %v115
    %v117 = vrot.slane %v89, %v116
    %v128 = vunpack.c.l.b16 %v95
    %v129 = vunpack.c.h.b16 %v95
    %v130 = vunpack.c.l.b16 %v96
    %v131 = vunpack.c.h.b16 %v96
    %v132 = vunpack.c.l.b16 %v97
    %v133 = vunpack.c.h.b16 %v97
    %v134 = vunpack.c.l.b16 %v98
    %v135 = vunpack.c.h.b16 %v98
    %v136 = vunpack.c.l.b16 %v99
    %v137 = vunpack.c.h.b16 %v99
    %v138 = vunpack.c.l.b16 %v100
    %v139 = vunpack.c.h.b16 %v100
    %v140 = vpack.c.b16 %v132, %v128
    %v141 = vpack.c.b16 %v133, %v129
    %v142 = vpack.c.b16 %v134, %v130
    %v143 = vpack.c.b16 %v135, %v131
    %v144 = vpack.c.b16 %v136, %v136
    %v145 = vpack.c.b16 %v137, %v137
    %v146 = vpack.c.b16 %v138, %v138
    %v147 = vpack.c.b16 %v139, %v139
    %vm152 = vcmask 195584
    %v154 = vsel %vm152, %v94, 0
    %vm156 = vcmask 1043456
    %v158 = vsel %vm156, %v144, 0
    %v161 = vsel %vm156, %v145, 0
    %v164 = vsel %vm156, %v146, 0
    %v167 = vsel %vm156, %v147, 0
    %169 = vmatprep.subr.bf16.mxu0 0
    %170 = vmatpush1.bf16.msra.mxu0 0
    %171 = vmatprep.subr.bf16.mxu0 0
    %172 = vmatpush1.bf16.msra.mxu0 0
    %173 = vmatprep.subr.bf16.mxu0 0
    %174 = vmatpush1.bf16.msra.mxu0 0
    %175 = vmatprep.subr.bf16.mxu0 0
    %176 = vmatpush1.bf16.msra.mxu0 0
    %177 = vmatprep.subr.bf16.mxu0 0
    %178 = vmatpush1.bf16.msra.mxu0 0
    %179 = vmatprep.subr.bf16.mxu0 0
    %180 = vmatpush1.bf16.msra.mxu0 0
    %181 = vmatprep.subr.bf16.mxu0 %v161
    %182 = vmatpush1.bf16.msra.mxu0 %v158
    %183 = vmatprep.subr.bf16.mxu0 %v141
    %184 = vmatpush1.bf16.msra.mxu0 %v140
    %185 = vmatprep.subr.bf16.mxu0 0
    %186 = vmatpush2.bf16.msra.mxu0 0
    %187 = vmatprep.subr.bf16.mxu0 0
    %188 = vmatpush2.bf16.msra.mxu0 0
    %189 = vmatprep.subr.bf16.mxu0 0
    %190 = vmatpush2.bf16.msra.mxu0 0
    %191 = vmatprep.subr.bf16.mxu0 0
    %192 = vmatpush2.bf16.msra.mxu0 0
    %193 = vmatprep.subr.bf16.mxu0 0
    %194 = vmatpush2.bf16.msra.mxu0 0
    %195 = vmatprep.subr.bf16.mxu0 0
    %196 = vmatpush2.bf16.msra.mxu0 0
    %197 = vmatprep.subr.bf16.mxu0 0
    %198 = vmatpush2.bf16.msra.mxu0 0
    %199 = vmatprep.subr.bf16.mxu0 0
    %200 = vmatpush2.bf16.msra.mxu0 0
    %201 = vmatprep.mubr.bf16.mxu0 0
    %202 = vmatmul.mubr.bf16.gmra.mxu0 %v154
    %v203 = vpop.f32.mrf.mxu0
    %v204 = vadd.f32 %v105, %v203
    %v205 = vpop.f32.mrf.mxu0
    %v206 = vadd.f32 %v109, %v205
    %v207 = vpop.f32.mrf.mxu0
    %v208 = vpop.f32.mrf.mxu0
    %209 = vdwg.mxu0
    %210 = vmatprep.subr.bf16.mxu0 0
    %211 = vmatpush1.bf16.msra.mxu0 0
    %212 = vmatprep.subr.bf16.mxu0 0
    %213 = vmatpush1.bf16.msra.mxu0 0
    %214 = vmatprep.subr.bf16.mxu0 0
    %215 = vmatpush1.bf16.msra.mxu0 0
    %216 = vmatprep.subr.bf16.mxu0 0
    %217 = vmatpush1.bf16.msra.mxu0 0
    %218 = vmatprep.subr.bf16.mxu0 0
    %219 = vmatpush1.bf16.msra.mxu0 0
    %220 = vmatprep.subr.bf16.mxu0 0
    %221 = vmatpush1.bf16.msra.mxu0 0
    %222 = vmatprep.subr.bf16.mxu0 %v167
    %223 = vmatpush1.bf16.msra.mxu0 %v164
    %224 = vmatprep.subr.bf16.mxu0 %v143
    %225 = vmatpush1.bf16.msra.mxu0 %v142
    %226 = vmatprep.subr.bf16.mxu0 0
    %227 = vmatpush2.bf16.msra.mxu0 0
    %228 = vmatprep.subr.bf16.mxu0 0
    %229 = vmatpush2.bf16.msra.mxu0 0
    %230 = vmatprep.subr.bf16.mxu0 0
    %231 = vmatpush2.bf16.msra.mxu0 0
    %232 = vmatprep.subr.bf16.mxu0 0
    %233 = vmatpush2.bf16.msra.mxu0 0
    %234 = vmatprep.subr.bf16.mxu0 0
    %235 = vmatpush2.bf16.msra.mxu0 0
    %236 = vmatprep.subr.bf16.mxu0 0
    %237 = vmatpush2.bf16.msra.mxu0 0
    %238 = vmatprep.subr.bf16.mxu0 0
    %239 = vmatpush2.bf16.msra.mxu0 0
    %240 = vmatprep.subr.bf16.mxu0 0
    %241 = vmatpush2.bf16.msra.mxu0 0
    %242 = vmatprep.mubr.bf16.mxu0 0
    %243 = vmatmul.mubr.bf16.gmra.mxu0 %v154
    %v244 = vpop.f32.mrf.mxu0
    %v245 = vadd.f32 %v113, %v244
    %v246 = vpop.f32.mrf.mxu0
    %v247 = vadd.f32 %v117, %v246
    %v248 = vpop.f32.mrf.mxu0
    %v249 = vpop.f32.mrf.mxu0
    %250 = vdwg.mxu0
    %v251 = vmax.f32 %v204, 0.0
    %v252 = vmax.f32 %v206, 0.0
    %v253 = vmax.f32 %v245, 0.0
    %v254 = vmax.f32 %v247, 0.0
    %v255 = vpack.c.bf16 %v251, %v251
    %v256 = vpack.c.bf16 %v252, %v252
    %v257 = vpack.c.bf16 %v253, %v253
    %v258 = vpack.c.bf16 %v254, %v254
    %v259 = vld [vmem:[#allocation7] sm:$0xff]
    %v260 = vld [vmem:[#allocation7 + $0x8] sm:$0xff]
    %v261 = vld [vmem:[#allocation7 + $0x10] sm:$0xff]
    %v262 = vld [vmem:[#allocation7 + $0x18] sm:$0xff]
    %v263 = vld [vmem:[#allocation7 + $0x20] sm:$0xff]
    %v264 = vld [vmem:[#allocation7 + $0x28] sm:$0xff]
    %v265 = vld [vmem:[#allocation7 + $0x30] sm:$0xff]
    %v266 = vld [vmem:[#allocation7 + $0x38] sm:$0xff]
    %v267 = vld [vmem:[#allocation7 + $0x40] sm:$0xff]
    %v268 = vld [vmem:[#allocation7 + $0x48] sm:$0xff]
    %v269 = vld [vmem:[#allocation7 + $0x50] sm:$0xff]
    %v270 = vld [vmem:[#allocation7 + $0x58] sm:$0xff]
    %v271 = vld [vmem:[#allocation7 + $0x60] sm:$0xff]
    %v272 = vld [vmem:[#allocation7 + $0x68] sm:$0xff]
    %v273 = vld [vmem:[#allocation7 + $0x70] sm:$0xff]
    %v274 = vld [vmem:[#allocation7 + $0x78] sm:$0xff]
    %v275 = vld [vmem:[#allocation7 + $0x80] sm:$0xff]
    %v276 = vld [vmem:[#allocation7 + $0x88] sm:$0xff]
    %v277 = vld [vmem:[#allocation7 + $0x90] sm:$0xff]
    %v278 = vld [vmem:[#allocation7 + $0x98] sm:$0xff]
    %v279 = vld [vmem:[#allocation7 + $0xa0] sm:$0xff]
    %v280 = vld [vmem:[#allocation7 + $0xa8] sm:$0xff]
    %v281 = vld [vmem:[#allocation7 + $0xb0] sm:$0xff]
    %v282 = vld [vmem:[#allocation7 + $0xb8] sm:$0xff]
    %v283 = vld [vmem:[#allocation7 + $0xc0] sm:$0xff]
    %v284 = vld [vmem:[#allocation7 + $0xc8] sm:$0xff]
    %v285 = vld [vmem:[#allocation7 + $0xd0] sm:$0xff]
    %v286 = vld [vmem:[#allocation7 + $0xd8] sm:$0xff]
    %v287 = vld [vmem:[#allocation7 + $0xe0] sm:$0xff]
    %v288 = vld [vmem:[#allocation7 + $0xe8] sm:$0xff]
    %v289 = vld [vmem:[#allocation7 + $0xf0] sm:$0xff]
    %v290 = vld [vmem:[#allocation7 + $0xf8] sm:$0xff]
    %v291 = vld [vmem:[#allocation7 + $0x100] sm:$0xff]
    %v292 = vld [vmem:[#allocation7 + $0x108] sm:$0xff]
    %v293 = vld [vmem:[#allocation7 + $0x110] sm:$0xff]
    %v294 = vld [vmem:[#allocation7 + $0x118] sm:$0xff]
    %v295 = vld [vmem:[#allocation7 + $0x120] sm:$0xff]
    %v296 = vld [vmem:[#allocation7 + $0x128] sm:$0xff]
    %v297 = vld [vmem:[#allocation7 + $0x130] sm:$0xff]
    %v298 = vld [vmem:[#allocation7 + $0x138] sm:$0xff]
    %v299 = vld [vmem:[#allocation7 + $0x140] sm:$0xff]
    %v300 = vld [vmem:[#allocation7 + $0x148] sm:$0xff]
    %v301 = vld [vmem:[#allocation7 + $0x150] sm:$0xff]
    %v302 = vld [vmem:[#allocation7 + $0x158] sm:$0xff]
    %v303 = vld [vmem:[#allocation7 + $0x160] sm:$0xff]
    %v304 = vld [vmem:[#allocation7 + $0x168] sm:$0xff]
    %v305 = vld [vmem:[#allocation7 + $0x170] sm:$0xff]
    %v306 = vld [vmem:[#allocation7 + $0x178] sm:$0xff]
    %v307 = vld [vmem:[#allocation7 + $0x180] sm:$0xff]
    %v308 = vld [vmem:[#allocation7 + $0x188] sm:$0xff]
    %v309 = vld [vmem:[#allocation7 + $0x190] sm:$0xff]
    %v310 = vld [vmem:[#allocation7 + $0x198] sm:$0xff]
    %v311 = vld [vmem:[#allocation7 + $0x1a0] sm:$0xff]
    %v312 = vld [vmem:[#allocation7 + $0x1a8] sm:$0xff]
    %v313 = vld [vmem:[#allocation7 + $0x1b0] sm:$0xff]
    %v314 = vld [vmem:[#allocation7 + $0x1b8] sm:$0xff]
    %v315 = vld [vmem:[#allocation7 + $0x1c0] sm:$0xff]
    %v316 = vld [vmem:[#allocation7 + $0x1c8] sm:$0xff]
    %v317 = vld [vmem:[#allocation7 + $0x1d0] sm:$0xff]
    %v318 = vld [vmem:[#allocation7 + $0x1d8] sm:$0xff]
    %v319 = vld [vmem:[#allocation7 + $0x1e0] sm:$0xff]
    %v320 = vld [vmem:[#allocation7 + $0x1e8] sm:$0xff]
    %v321 = vld [vmem:[#allocation7 + $0x1f0] sm:$0xff]
    %v322 = vld [vmem:[#allocation7 + $0x1f8] sm:$0xff]
    %v324 = vlaneseq
    %v325 = vshrl.u32 %v324, 7
    %v326 = vsub.s32 0, %v325
    %v327 = vrot.slane %v90, %v326
    %v328 = vlaneseq
    %v329 = vshrl.u32 %v328, 7
    %v330 = vsub.s32 1, %v329
    %v331 = vrot.slane %v90, %v330
    %v398 = vunpack.c.l.b16 %v259
    %v399 = vunpack.c.h.b16 %v259
    %v400 = vunpack.c.l.b16 %v260
    %v401 = vunpack.c.h.b16 %v260
    %v402 = vunpack.c.l.b16 %v261
    %v403 = vunpack.c.h.b16 %v261
    %v404 = vunpack.c.l.b16 %v262
    %v405 = vunpack.c.h.b16 %v262
    %v406 = vunpack.c.l.b16 %v263
    %v407 = vunpack.c.h.b16 %v263
    %v408 = vunpack.c.l.b16 %v264
    %v409 = vunpack.c.h.b16 %v264
    %v410 = vunpack.c.l.b16 %v265
    %v411 = vunpack.c.h.b16 %v265
    %v412 = vunpack.c.l.b16 %v266
    %v413 = vunpack.c.h.b16 %v266
    %v414 = vunpack.c.l.b16 %v267
    %v415 = vunpack.c.h.b16 %v267
    %v416 = vunpack.c.l.b16 %v268
    %v417 = vunpack.c.h.b16 %v268
    %v418 = vunpack.c.l.b16 %v269
    %v419 = vunpack.c.h.b16 %v269
    %v420 = vunpack.c.l.b16 %v270
    %v421 = vunpack.c.h.b16 %v270
    %v422 = vunpack.c.l.b16 %v271
    %v423 = vunpack.c.h.b16 %v271
    %v424 = vunpack.c.l.b16 %v272
    %v425 = vunpack.c.h.b16 %v272
    %v426 = vunpack.c.l.b16 %v273
    %v427 = vunpack.c.h.b16 %v273
    %v428 = vunpack.c.l.b16 %v274
    %v429 = vunpack.c.h.b16 %v274
    %v430 = vunpack.c.l.b16 %v275
    %v431 = vunpack.c.h.b16 %v275
    %v432 = vunpack.c.l.b16 %v276
    %v433 = vunpack.c.h.b16 %v276
    %v434 = vunpack.c.l.b16 %v277
    %v435 = vunpack.c.h.b16 %v277
    %v436 = vunpack.c.l.b16 %v278
    %v437 = vunpack.c.h.b16 %v278
    %v438 = vunpack.c.l.b16 %v279
    %v439 = vunpack.c.h.b16 %v279
    %v440 = vunpack.c.l.b16 %v280
    %v441 = vunpack.c.h.b16 %v280
    %v442 = vunpack.c.l.b16 %v281
    %v443 = vunpack.c.h.b16 %v281
    %v444 = vunpack.c.l.b16 %v282
    %v445 = vunpack.c.h.b16 %v282
    %v446 = vunpack.c.l.b16 %v283
    %v447 = vunpack.c.h.b16 %v283
    %v448 = vunpack.c.l.b16 %v284
    %v449 = vunpack.c.h.b16 %v284
    %v450 = vunpack.c.l.b16 %v285
    %v451 = vunpack.c.h.b16 %v285
    %v452 = vunpack.c.l.b16 %v286
    %v453 = vunpack.c.h.b16 %v286
    %v454 = vunpack.c.l.b16 %v287
    %v455 = vunpack.c.h.b16 %v287
    %v456 = vunpack.c.l.b16 %v288
    %v457 = vunpack.c.h.b16 %v288
    %v458 = vunpack.c.l.b16 %v289
    %v459 = vunpack.c.h.b16 %v289
    %v460 = vunpack.c.l.b16 %v290
    %v461 = vunpack.c.h.b16 %v290
    %v462 = vunpack.c.l.b16 %v291
    %v463 = vunpack.c.h.b16 %v291
    %v464 = vunpack.c.l.b16 %v292
    %v465 = vunpack.c.h.b16 %v292
    %v466 = vunpack.c.l.b16 %v293
    %v467 = vunpack.c.h.b16 %v293
    %v468 = vunpack.c.l.b16 %v294
    %v469 = vunpack.c.h.b16 %v294
    %v470 = vunpack.c.l.b16 %v295
    %v471 = vunpack.c.h.b16 %v295
    %v472 = vunpack.c.l.b16 %v296
    %v473 = vunpack.c.h.b16 %v296
    %v474 = vunpack.c.l.b16 %v297
    %v475 = vunpack.c.h.b16 %v297
    %v476 = vunpack.c.l.b16 %v298
    %v477 = vunpack.c.h.b16 %v298
    %v478 = vunpack.c.l.b16 %v299
    %v479 = vunpack.c.h.b16 %v299
    %v480 = vunpack.c.l.b16 %v300
    %v481 = vunpack.c.h.b16 %v300
    %v482 = vunpack.c.l.b16 %v301
    %v483 = vunpack.c.h.b16 %v301
    %v484 = vunpack.c.l.b16 %v302
    %v485 = vunpack.c.h.b16 %v302
    %v486 = vunpack.c.l.b16 %v303
    %v487 = vunpack.c.h.b16 %v303
    %v488 = vunpack.c.l.b16 %v304
    %v489 = vunpack.c.h.b16 %v304
    %v490 = vunpack.c.l.b16 %v305
    %v491 = vunpack.c.h.b16 %v305
    %v492 = vunpack.c.l.b16 %v306
    %v493 = vunpack.c.h.b16 %v306
    %v494 = vunpack.c.l.b16 %v307
    %v495 = vunpack.c.h.b16 %v307
    %v496 = vunpack.c.l.b16 %v308
    %v497 = vunpack.c.h.b16 %v308
    %v498 = vunpack.c.l.b16 %v309
    %v499 = vunpack.c.h.b16 %v309
    %v500 = vunpack.c.l.b16 %v310
    %v501 = vunpack.c.h.b16 %v310
    %v502 = vunpack.c.l.b16 %v311
    %v503 = vunpack.c.h.b16 %v311
    %v504 = vunpack.c.l.b16 %v312
    %v505 = vunpack.c.h.b16 %v312
    %v506 = vunpack.c.l.b16 %v313
    %v507 = vunpack.c.h.b16 %v313
    %v508 = vunpack.c.l.b16 %v314
    %v509 = vunpack.c.h.b16 %v314
    %v510 = vunpack.c.l.b16 %v315
    %v511 = vunpack.c.h.b16 %v315
    %v512 = vunpack.c.l.b16 %v316
    %v513 = vunpack.c.h.b16 %v316
    %v514 = vunpack.c.l.b16 %v317
    %v515 = vunpack.c.h.b16 %v317
    %v516 = vunpack.c.l.b16 %v318
    %v517 = vunpack.c.h.b16 %v318
    %v518 = vunpack.c.l.b16 %v319
    %v519 = vunpack.c.h.b16 %v319
    %v520 = vunpack.c.l.b16 %v320
    %v521 = vunpack.c.h.b16 %v320
    %v522 = vunpack.c.l.b16 %v321
    %v523 = vunpack.c.h.b16 %v321
    %v524 = vunpack.c.l.b16 %v322
    %v525 = vunpack.c.h.b16 %v322
    %v526 = vpack.c.b16 %v400, %v398
    %v527 = vpack.c.b16 %v401, %v399
    %v528 = vpack.c.b16 %v404, %v402
    %v529 = vpack.c.b16 %v405, %v403
    %v530 = vpack.c.b16 %v408, %v406
    %v531 = vpack.c.b16 %v409, %v407
    %v532 = vpack.c.b16 %v412, %v410
    %v533 = vpack.c.b16 %v413, %v411
    %v534 = vpack.c.b16 %v416, %v414
    %v535 = vpack.c.b16 %v417, %v415
    %v536 = vpack.c.b16 %v420, %v418
    %v537 = vpack.c.b16 %v421, %v419
    %v538 = vpack.c.b16 %v424, %v422
    %v539 = vpack.c.b16 %v425, %v423
    %v540 = vpack.c.b16 %v428, %v426
    %v541 = vpack.c.b16 %v429, %v427
    %v542 = vpack.c.b16 %v432, %v430
    %v543 = vpack.c.b16 %v433, %v431
    %v544 = vpack.c.b16 %v436, %v434
    %v545 = vpack.c.b16 %v437, %v435
    %v546 = vpack.c.b16 %v440, %v438
    %v547 = vpack.c.b16 %v441, %v439
    %v548 = vpack.c.b16 %v444, %v442
    %v549 = vpack.c.b16 %v445, %v443
    %v550 = vpack.c.b16 %v448, %v446
    %v551 = vpack.c.b16 %v449, %v447
    %v552 = vpack.c.b16 %v452, %v450
    %v553 = vpack.c.b16 %v453, %v451
    %v554 = vpack.c.b16 %v456, %v454
    %v555 = vpack.c.b16 %v457, %v455
    %v556 = vpack.c.b16 %v460, %v458
    %v557 = vpack.c.b16 %v461, %v459
    %v558 = vpack.c.b16 %v464, %v462
    %v559 = vpack.c.b16 %v465, %v463
    %v560 = vpack.c.b16 %v468, %v466
    %v561 = vpack.c.b16 %v469, %v467
    %v562 = vpack.c.b16 %v472, %v470
    %v563 = vpack.c.b16 %v473, %v471
    %v564 = vpack.c.b16 %v476, %v474
    %v565 = vpack.c.b16 %v477, %v475
    %v566 = vpack.c.b16 %v480, %v478
    %v567 = vpack.c.b16 %v481, %v479
    %v568 = vpack.c.b16 %v484, %v482
    %v569 = vpack.c.b16 %v485, %v483
    %v570 = vpack.c.b16 %v488, %v486
    %v571 = vpack.c.b16 %v489, %v487
    %v572 = vpack.c.b16 %v492, %v490
    %v573 = vpack.c.b16 %v493, %v491
    %v574 = vpack.c.b16 %v496, %v494
    %v575 = vpack.c.b16 %v497, %v495
    %v576 = vpack.c.b16 %v500, %v498
    %v577 = vpack.c.b16 %v501, %v499
    %v578 = vpack.c.b16 %v504, %v502
    %v579 = vpack.c.b16 %v505, %v503
    %v580 = vpack.c.b16 %v508, %v506
    %v581 = vpack.c.b16 %v509, %v507
    %v582 = vpack.c.b16 %v512, %v510
    %v583 = vpack.c.b16 %v513, %v511
    %v584 = vpack.c.b16 %v516, %v514
    %v585 = vpack.c.b16 %v517, %v515
    %v586 = vpack.c.b16 %v520, %v518
    %v587 = vpack.c.b16 %v521, %v519
    %v588 = vpack.c.b16 %v524, %v522
    %v589 = vpack.c.b16 %v525, %v523
    %654 = vmatprep.subr.bf16.mxu0 %v541
    %655 = vmatpush1.bf16.msra.mxu0 %v540
    %656 = vmatprep.subr.bf16.mxu0 %v539
    %657 = vmatpush1.bf16.msra.mxu0 %v538
    %658 = vmatprep.subr.bf16.mxu0 %v537
    %659 = vmatpush1.bf16.msra.mxu0 %v536
    %660 = vmatprep.subr.bf16.mxu0 %v535
    %661 = vmatpush1.bf16.msra.mxu0 %v534
    %662 = vmatprep.subr.bf16.mxu0 %v533
    %663 = vmatpush1.bf16.msra.mxu0 %v532
    %664 = vmatprep.subr.bf16.mxu0 %v531
    %665 = vmatpush1.bf16.msra.mxu0 %v530
    %666 = vmatprep.subr.bf16.mxu0 %v529
    %667 = vmatpush1.bf16.msra.mxu0 %v528
    %668 = vmatprep.subr.bf16.mxu0 %v527
    %669 = vmatpush1.bf16.msra.mxu0 %v526
    %670 = vmatprep.subr.bf16.mxu0 %v557
    %671 = vmatpush2.bf16.msra.mxu0 %v556
    %672 = vmatprep.subr.bf16.mxu0 %v555
    %673 = vmatpush2.bf16.msra.mxu0 %v554
    %674 = vmatprep.subr.bf16.mxu0 %v553
    %675 = vmatpush2.bf16.msra.mxu0 %v552
    %676 = vmatprep.subr.bf16.mxu0 %v551
    %677 = vmatpush2.bf16.msra.mxu0 %v550
    %678 = vmatprep.subr.bf16.mxu0 %v549
    %679 = vmatpush2.bf16.msra.mxu0 %v548
    %680 = vmatprep.subr.bf16.mxu0 %v547
    %681 = vmatpush2.bf16.msra.mxu0 %v546
    %682 = vmatprep.subr.bf16.mxu0 %v545
    %683 = vmatpush2.bf16.msra.mxu0 %v544
    %684 = vmatprep.subr.bf16.mxu0 %v543
    %685 = vmatpush2.bf16.msra.mxu0 %v542
    %686 = vmatprep.mubr.bf16.mxu0 %v256
    %687 = vmatmul.mubr.bf16.gmra.mxu0 %v255
    %v688 = vpop.f32.mrf.mxu0
    %v689 = vadd.f32 %v327, %v688
    %v690 = vpop.f32.mrf.mxu0
    %v691 = vadd.f32 %v331, %v690
    %v692 = vpop.f32.mrf.mxu0
    %v693 = vpop.f32.mrf.mxu0
    %694 = vdwg.mxu0
    %695 = vmatprep.subr.bf16.mxu0 %v573
    %696 = vmatpush1.bf16.msra.mxu0 %v572
    %697 = vmatprep.subr.bf16.mxu0 %v571
    %698 = vmatpush1.bf16.msra.mxu0 %v570
    %699 = vmatprep.subr.bf16.mxu0 %v569
    %700 = vmatpush1.bf16.msra.mxu0 %v568
    %701 = vmatprep.subr.bf16.mxu0 %v567
    %702 = vmatpush1.bf16.msra.mxu0 %v566
    %703 = vmatprep.subr.bf16.mxu0 %v565
    %704 = vmatpush1.bf16.msra.mxu0 %v564
    %705 = vmatprep.subr.bf16.mxu0 %v563
    %706 = vmatpush1.bf16.msra.mxu0 %v562
    %707 = vmatprep.subr.bf16.mxu0 %v561
    %708 = vmatpush1.bf16.msra.mxu0 %v560
    %709 = vmatprep.subr.bf16.mxu0 %v559
    %710 = vmatpush1.bf16.msra.mxu0 %v558
    %711 = vmatprep.subr.bf16.mxu0 %v589
    %712 = vmatpush2.bf16.msra.mxu0 %v588
    %713 = vmatprep.subr.bf16.mxu0 %v587
    %714 = vmatpush2.bf16.msra.mxu0 %v586
    %715 = vmatprep.subr.bf16.mxu0 %v585
    %716 = vmatpush2.bf16.msra.mxu0 %v584
    %717 = vmatprep.subr.bf16.mxu0 %v583
    %718 = vmatpush2.bf16.msra.mxu0 %v582
    %719 = vmatprep.subr.bf16.mxu0 %v581
    %720 = vmatpush2.bf16.msra.mxu0 %v580
    %721 = vmatprep.subr.bf16.mxu0 %v579
    %722 = vmatpush2.bf16.msra.mxu0 %v578
    %723 = vmatprep.subr.bf16.mxu0 %v577
    %724 = vmatpush2.bf16.msra.mxu0 %v576
    %725 = vmatprep.subr.bf16.mxu0 %v575
    %726 = vmatpush2.bf16.msra.mxu0 %v574
    %727 = vmatprep.mubr.bf16.mxu0 %v258
    %728 = vmatmul.mubr.bf16.gmra.mxu0 %v257
    %v729 = vpop.f32.mrf.mxu0
    %v730 = vadd.f32 %v689, %v729
    %v731 = vpop.f32.mrf.mxu0
    %v732 = vadd.f32 %v691, %v731
    %v733 = vpop.f32.mrf.mxu0
    %v734 = vpop.f32.mrf.mxu0
    %735 = vdwg.mxu0
    %v736 = vmax.f32 %v730, 0.0
    %v737 = vmax.f32 %v732, 0.0
    %v738 = vpack.c.bf16 %v736, %v736
    %v739 = vpack.c.bf16 %v737, %v737
    %v740 = vld [vmem:[#allocation8] sm:$0xf]
    %v741 = vld [vmem:[#allocation8 + $0x4] sm:$0xf]
    %v742 = vld [vmem:[#allocation8 + $0x8] sm:$0xf]
    %v743 = vld [vmem:[#allocation8 + $0xc] sm:$0xf]
    %v744 = vld [vmem:[#allocation8 + $0x10] sm:$0xf]
    %v745 = vld [vmem:[#allocation8 + $0x14] sm:$0xf]
    %v746 = vld [vmem:[#allocation8 + $0x18] sm:$0xf]
    %v747 = vld [vmem:[#allocation8 + $0x1c] sm:$0xf]
    %v748 = vld [vmem:[#allocation8 + $0x20] sm:$0xf]
    %v749 = vld [vmem:[#allocation8 + $0x24] sm:$0xf]
    %v750 = vld [vmem:[#allocation8 + $0x28] sm:$0xf]
    %v751 = vld [vmem:[#allocation8 + $0x2c] sm:$0xf]
    %v752 = vld [vmem:[#allocation8 + $0x30] sm:$0xf]
    %v753 = vld [vmem:[#allocation8 + $0x34] sm:$0xf]
    %v754 = vld [vmem:[#allocation8 + $0x38] sm:$0xf]
    %v755 = vld [vmem:[#allocation8 + $0x3c] sm:$0xf]
    %v756 = vld [vmem:[#allocation8 + $0x40] sm:$0xf]
    %v757 = vld [vmem:[#allocation8 + $0x44] sm:$0xf]
    %v758 = vld [vmem:[#allocation8 + $0x48] sm:$0xf]
    %v759 = vld [vmem:[#allocation8 + $0x4c] sm:$0xf]
    %v760 = vld [vmem:[#allocation8 + $0x50] sm:$0xf]
    %v761 = vld [vmem:[#allocation8 + $0x54] sm:$0xf]
    %v762 = vld [vmem:[#allocation8 + $0x58] sm:$0xf]
    %v763 = vld [vmem:[#allocation8 + $0x5c] sm:$0xf]
    %v764 = vld [vmem:[#allocation8 + $0x60] sm:$0xf]
    %v765 = vld [vmem:[#allocation8 + $0x64] sm:$0xf]
    %v766 = vld [vmem:[#allocation8 + $0x68] sm:$0xf]
    %v767 = vld [vmem:[#allocation8 + $0x6c] sm:$0xf]
    %v768 = vld [vmem:[#allocation8 + $0x70] sm:$0xf]
    %v769 = vld [vmem:[#allocation8 + $0x74] sm:$0xf]
    %v770 = vld [vmem:[#allocation8 + $0x78] sm:$0xf]
    %v771 = vld [vmem:[#allocation8 + $0x7c] sm:$0xf]
    %v773 = vlaneseq
    %v774 = vshrl.u32 %v773, 7
    %v775 = vsub.s32 0, %v774
    %v776 = vrot.slane %v91, %v775
    %v810 = vunpack.c.l.b16 %v740
    %v811 = vunpack.c.l.b16 %v741
    %v812 = vunpack.c.l.b16 %v742
    %v813 = vunpack.c.l.b16 %v743
    %v814 = vunpack.c.l.b16 %v744
    %v815 = vunpack.c.l.b16 %v745
    %v816 = vunpack.c.l.b16 %v746
    %v817 = vunpack.c.l.b16 %v747
    %v818 = vunpack.c.l.b16 %v748
    %v819 = vunpack.c.l.b16 %v749
    %v820 = vunpack.c.l.b16 %v750
    %v821 = vunpack.c.l.b16 %v751
    %v822 = vunpack.c.l.b16 %v752
    %v823 = vunpack.c.l.b16 %v753
    %v824 = vunpack.c.l.b16 %v754
    %v825 = vunpack.c.l.b16 %v755
    %v826 = vunpack.c.l.b16 %v756
    %v827 = vunpack.c.l.b16 %v757
    %v828 = vunpack.c.l.b16 %v758
    %v829 = vunpack.c.l.b16 %v759
    %v830 = vunpack.c.l.b16 %v760
    %v831 = vunpack.c.l.b16 %v761
    %v832 = vunpack.c.l.b16 %v762
    %v833 = vunpack.c.l.b16 %v763
    %v834 = vunpack.c.l.b16 %v764
    %v835 = vunpack.c.l.b16 %v765
    %v836 = vunpack.c.l.b16 %v766
    %v837 = vunpack.c.l.b16 %v767
    %v838 = vunpack.c.l.b16 %v768
    %v839 = vunpack.c.l.b16 %v769
    %v840 = vunpack.c.l.b16 %v770
    %v841 = vunpack.c.l.b16 %v771
    %v842 = vpack.c.b16 %v811, %v810
    %v843 = vpack.c.b16 %v813, %v812
    %v844 = vpack.c.b16 %v815, %v814
    %v845 = vpack.c.b16 %v817, %v816
    %v846 = vpack.c.b16 %v819, %v818
    %v847 = vpack.c.b16 %v821, %v820
    %v848 = vpack.c.b16 %v823, %v822
    %v849 = vpack.c.b16 %v825, %v824
    %v850 = vpack.c.b16 %v827, %v826
    %v851 = vpack.c.b16 %v829, %v828
    %v852 = vpack.c.b16 %v831, %v830
    %v853 = vpack.c.b16 %v833, %v832
    %v854 = vpack.c.b16 %v835, %v834
    %v855 = vpack.c.b16 %v837, %v836
    %v856 = vpack.c.b16 %v839, %v838
    %v857 = vpack.c.b16 %v841, %v840
    %874 = vmatprep.subr.bf16.mxu0 0
    %875 = vmatpush1.bf16.msra.mxu0 %v849
    %876 = vmatprep.subr.bf16.mxu0 0
    %877 = vmatpush1.bf16.msra.mxu0 %v848
    %878 = vmatprep.subr.bf16.mxu0 0
    %879 = vmatpush1.bf16.msra.mxu0 %v847
    %880 = vmatprep.subr.bf16.mxu0 0
    %881 = vmatpush1.bf16.msra.mxu0 %v846
    %882 = vmatprep.subr.bf16.mxu0 0
    %883 = vmatpush1.bf16.msra.mxu0 %v845
    %884 = vmatprep.subr.bf16.mxu0 0
    %885 = vmatpush1.bf16.msra.mxu0 %v844
    %886 = vmatprep.subr.bf16.mxu0 0
    %887 = vmatpush1.bf16.msra.mxu0 %v843
    %888 = vmatprep.subr.bf16.mxu0 0
    %889 = vmatpush1.bf16.msra.mxu0 %v842
    %890 = vmatprep.subr.bf16.mxu0 0
    %891 = vmatpush2.bf16.msra.mxu0 %v857
    %892 = vmatprep.subr.bf16.mxu0 0
    %893 = vmatpush2.bf16.msra.mxu0 %v856
    %894 = vmatprep.subr.bf16.mxu0 0
    %895 = vmatpush2.bf16.msra.mxu0 %v855
    %896 = vmatprep.subr.bf16.mxu0 0
    %897 = vmatpush2.bf16.msra.mxu0 %v854
    %898 = vmatprep.subr.bf16.mxu0 0
    %899 = vmatpush2.bf16.msra.mxu0 %v853
    %900 = vmatprep.subr.bf16.mxu0 0
    %901 = vmatpush2.bf16.msra.mxu0 %v852
    %902 = vmatprep.subr.bf16.mxu0 0
    %903 = vmatpush2.bf16.msra.mxu0 %v851
    %904 = vmatprep.subr.bf16.mxu0 0
    %905 = vmatpush2.bf16.msra.mxu0 %v850
    %906 = vmatprep.mubr.bf16.mxu0 %v739
    %907 = vmatmul.mubr.bf16.gmra.mxu0 %v738
    %v908 = vpop.f32.mrf.mxu0
    %v909 = vadd.f32 %v776, %v908
    %v910 = vpop.f32.mrf.mxu0
    %v911 = vpop.f32.mrf.mxu0
    %v912 = vpop.f32.mrf.mxu0
    %913 = vdwg.mxu0
    %v914 = vmax.f32 %v909, 0.0
    %v916 = vlaneseq
    %v917 = vshrl.u32 %v916, 7
    %v918 = vsub.s32 0, %v917
    %v919 = vrot.slane %v92, %v918
    %v921 = vmul.f32 %v914, %v919
    %922 = vadd.xlane.f32.xlu0 %v921
    %v923 = vpop.xlane.xlu0 %922
    %v924 = vstv %s93
    %v925 = vadd.f32 %v923, %v924
    %vm926 = vcmask 7168
    %927 = vst.msk [vmem:[%s9] sm:$0xff] %vm926, %v925
    %v928 = vld [vmem:[#allocation3 + $0x4] sm:$0xf]
    %v929 = vld [vmem:[#allocation5] sm:$0xff]
    %v930 = vld [vmem:[#allocation5 + $0x8] sm:$0xff]
    %v931 = vld [vmem:[#allocation5 + $0x10] sm:$0xff]
    %v932 = vld [vmem:[#allocation5 + $0x18] sm:$0xff]
    %v933 = vld [vmem:[#allocation5 + $0x20] sm:$0xff]
    %v934 = vld [vmem:[#allocation5 + $0x28] sm:$0xff]
    %v941 = vunpack.c.l.b16 %v929
    %v942 = vunpack.c.h.b16 %v929
    %v943 = vunpack.c.l.b16 %v930
    %v944 = vunpack.c.h.b16 %v930
    %v945 = vunpack.c.l.b16 %v931
    %v946 = vunpack.c.h.b16 %v931
    %v947 = vunpack.c.l.b16 %v932
    %v948 = vunpack.c.h.b16 %v932
    %v949 = vunpack.c.l.b16 %v933
    %v950 = vunpack.c.h.b16 %v933
    %v951 = vunpack.c.l.b16 %v934
    %v952 = vunpack.c.h.b16 %v934
    %v953 = vpack.c.b16 %v945, %v941
    %v954 = vpack.c.b16 %v946, %v942
    %v955 = vpack.c.b16 %v947, %v943
    %v956 = vpack.c.b16 %v948, %v944
    %v957 = vpack.c.b16 %v949, %v949
    %v958 = vpack.c.b16 %v950, %v950
    %v959 = vpack.c.b16 %v951, %v951
    %v960 = vpack.c.b16 %v952, %v952
    %v966 = vsel %vm152, %v928, 0
    %v969 = vsel %vm156, %v957, 0
    %v972 = vsel %vm156, %v958, 0
    %v975 = vsel %vm156, %v959, 0
    %v978 = vsel %vm156, %v960, 0
    %980 = vmatprep.subr.bf16.mxu0 0
    %981 = vmatpush1.bf16.msra.mxu0 0
    %982 = vmatprep.subr.bf16.mxu0 0
    %983 = vmatpush1.bf16.msra.mxu0 0
    %984 = vmatprep.subr.bf16.mxu0 0
    %985 = vmatpush1.bf16.msra.mxu0 0
    %986 = vmatprep.subr.bf16.mxu0 0
    %987 = vmatpush1.bf16.msra.mxu0 0
    %988 = vmatprep.subr.bf16.mxu0 0
    %989 = vmatpush1.bf16.msra.mxu0 0
    %990 = vmatprep.subr.bf16.mxu0 0
    %991 = vmatpush1.bf16.msra.mxu0 0
    %992 = vmatprep.subr.bf16.mxu0 %v972
    %993 = vmatpush1.bf16.msra.mxu0 %v969
    %994 = vmatprep.subr.bf16.mxu0 %v954
    %995 = vmatpush1.bf16.msra.mxu0 %v953
    %996 = vmatprep.subr.bf16.mxu0 0
    %997 = vmatpush2.bf16.msra.mxu0 0
    %998 = vmatprep.subr.bf16.mxu0 0
    %999 = vmatpush2.bf16.msra.mxu0 0
    %1000 = vmatprep.subr.bf16.mxu0 0
    %1001 = vmatpush2.bf16.msra.mxu0 0
    %1002 = vmatprep.subr.bf16.mxu0 0
    %1003 = vmatpush2.bf16.msra.mxu0 0
    %1004 = vmatprep.subr.bf16.mxu0 0
    %1005 = vmatpush2.bf16.msra.mxu0 0
    %1006 = vmatprep.subr.bf16.mxu0 0
    %1007 = vmatpush2.bf16.msra.mxu0 0
    %1008 = vmatprep.subr.bf16.mxu0 0
    %1009 = vmatpush2.bf16.msra.mxu0 0
    %1010 = vmatprep.subr.bf16.mxu0 0
    %1011 = vmatpush2.bf16.msra.mxu0 0
    %1012 = vmatprep.mubr.bf16.mxu0 0
    %1013 = vmatmul.mubr.bf16.gmra.mxu0 %v966
    %v1014 = vpop.f32.mrf.mxu0
    %v1015 = vadd.f32 %v105, %v1014
    %v1016 = vpop.f32.mrf.mxu0
    %v1017 = vadd.f32 %v109, %v1016
    %v1018 = vpop.f32.mrf.mxu0
    %v1019 = vpop.f32.mrf.mxu0
    %1020 = vdwg.mxu0
    %1021 = vmatprep.subr.bf16.mxu0 0
    %1022 = vmatpush1.bf16.msra.mxu0 0
    %1023 = vmatprep.subr.bf16.mxu0 0
    %1024 = vmatpush1.bf16.msra.mxu0 0
    %1025 = vmatprep.subr.bf16.mxu0 0
    %1026 = vmatpush1.bf16.msra.mxu0 0
    %1027 = vmatprep.subr.bf16.mxu0 0
    %1028 = vmatpush1.bf16.msra.mxu0 0
    %1029 = vmatprep.subr.bf16.mxu0 0
    %1030 = vmatpush1.bf16.msra.mxu0 0
    %1031 = vmatprep.subr.bf16.mxu0 0
    %1032 = vmatpush1.bf16.msra.mxu0 0
    %1033 = vmatprep.subr.bf16.mxu0 %v978
    %1034 = vmatpush1.bf16.msra.mxu0 %v975
    %1035 = vmatprep.subr.bf16.mxu0 %v956
    %1036 = vmatpush1.bf16.msra.mxu0 %v955
    %1037 = vmatprep.subr.bf16.mxu0 0
    %1038 = vmatpush2.bf16.msra.mxu0 0
    %1039 = vmatprep.subr.bf16.mxu0 0
    %1040 = vmatpush2.bf16.msra.mxu0 0
    %1041 = vmatprep.subr.bf16.mxu0 0
    %1042 = vmatpush2.bf16.msra.mxu0 0
    %1043 = vmatprep.subr.bf16.mxu0 0
    %1044 = vmatpush2.bf16.msra.mxu0 0
    %1045 = vmatprep.subr.bf16.mxu0 0
    %1046 = vmatpush2.bf16.msra.mxu0 0
    %1047 = vmatprep.subr.bf16.mxu0 0
    %1048 = vmatpush2.bf16.msra.mxu0 0
    %1049 = vmatprep.subr.bf16.mxu0 0
    %1050 = vmatpush2.bf16.msra.mxu0 0
    %1051 = vmatprep.subr.bf16.mxu0 0
    %1052 = vmatpush2.bf16.msra.mxu0 0
    %1053 = vmatprep.mubr.bf16.mxu0 0
    %1054 = vmatmul.mubr.bf16.gmra.mxu0 %v966
    %v1055 = vpop.f32.mrf.mxu0
    %v1056 = vadd.f32 %v113, %v1055
    %v1057 = vpop.f32.mrf.mxu0
    %v1058 = vadd.f32 %v117, %v1057
    %v1059 = vpop.f32.mrf.mxu0
    %v1060 = vpop.f32.mrf.mxu0
    %1061 = vdwg.mxu0
    %v1062 = vmax.f32 %v1015, 0.0
    %v1063 = vmax.f32 %v1017, 0.0
    %v1064 = vmax.f32 %v1056, 0.0
    %v1065 = vmax.f32 %v1058, 0.0
    %v1066 = vpack.c.bf16 %v1062, %v1062
    %v1067 = vpack.c.bf16 %v1063, %v1063
    %v1068 = vpack.c.bf16 %v1064, %v1064
    %v1069 = vpack.c.bf16 %v1065, %v1065
    %v1070 = vld [vmem:[#allocation7] sm:$0xff]
    %v1071 = vld [vmem:[#allocation7 + $0x8] sm:$0xff]
    %v1072 = vld [vmem:[#allocation7 + $0x10] sm:$0xff]
    %v1073 = vld [vmem:[#allocation7 + $0x18] sm:$0xff]
    %v1074 = vld [vmem:[#allocation7 + $0x20] sm:$0xff]
    %v1075 = vld [vmem:[#allocation7 + $0x28] sm:$0xff]
    %v1076 = vld [vmem:[#allocation7 + $0x30] sm:$0xff]
    %v1077 = vld [vmem:[#allocation7 + $0x38] sm:$0xff]
    %v1078 = vld [vmem:[#allocation7 + $0x40] sm:$0xff]
    %v1079 = vld [vmem:[#allocation7 + $0x48] sm:$0xff]
    %v1080 = vld [vmem:[#allocation7 + $0x50] sm:$0xff]
    %v1081 = vld [vmem:[#allocation7 + $0x58] sm:$0xff]
    %v1082 = vld [vmem:[#allocation7 + $0x60] sm:$0xff]
    %v1083 = vld [vmem:[#allocation7 + $0x68] sm:$0xff]
    %v1084 = vld [vmem:[#allocation7 + $0x70] sm:$0xff]
    %v1085 = vld [vmem:[#allocation7 + $0x78] sm:$0xff]
    %v1086 = vld [vmem:[#allocation7 + $0x80] sm:$0xff]
    %v1087 = vld [vmem:[#allocation7 + $0x88] sm:$0xff]
    %v1088 = vld [vmem:[#allocation7 + $0x90] sm:$0xff]
    %v1089 = vld [vmem:[#allocation7 + $0x98] sm:$0xff]
    %v1090 = vld [vmem:[#allocation7 + $0xa0] sm:$0xff]
    %v1091 = vld [vmem:[#allocation7 + $0xa8] sm:$0xff]
    %v1092 = vld [vmem:[#allocation7 + $0xb0] sm:$0xff]
    %v1093 = vld [vmem:[#allocation7 + $0xb8] sm:$0xff]
    %v1094 = vld [vmem:[#allocation7 + $0xc0] sm:$0xff]
    %v1095 = vld [vmem:[#allocation7 + $0xc8] sm:$0xff]
    %v1096 = vld [vmem:[#allocation7 + $0xd0] sm:$0xff]
    %v1097 = vld [vmem:[#allocation7 + $0xd8] sm:$0xff]
    %v1098 = vld [vmem:[#allocation7 + $0xe0] sm:$0xff]
    %v1099 = vld [vmem:[#allocation7 + $0xe8] sm:$0xff]
    %v1100 = vld [vmem:[#allocation7 + $0xf0] sm:$0xff]
    %v1101 = vld [vmem:[#allocation7 + $0xf8] sm:$0xff]
    %v1102 = vld [vmem:[#allocation7 + $0x100] sm:$0xff]
    %v1103 = vld [vmem:[#allocation7 + $0x108] sm:$0xff]
    %v1104 = vld [vmem:[#allocation7 + $0x110] sm:$0xff]
    %v1105 = vld [vmem:[#allocation7 + $0x118] sm:$0xff]
    %v1106 = vld [vmem:[#allocation7 + $0x120] sm:$0xff]
    %v1107 = vld [vmem:[#allocation7 + $0x128] sm:$0xff]
    %v1108 = vld [vmem:[#allocation7 + $0x130] sm:$0xff]
    %v1109 = vld [vmem:[#allocation7 + $0x138] sm:$0xff]
    %v1110 = vld [vmem:[#allocation7 + $0x140] sm:$0xff]
    %v1111 = vld [vmem:[#allocation7 + $0x148] sm:$0xff]
    %v1112 = vld [vmem:[#allocation7 + $0x150] sm:$0xff]
    %v1113 = vld [vmem:[#allocation7 + $0x158] sm:$0xff]
    %v1114 = vld [vmem:[#allocation7 + $0x160] sm:$0xff]
    %v1115 = vld [vmem:[#allocation7 + $0x168] sm:$0xff]
    %v1116 = vld [vmem:[#allocation7 + $0x170] sm:$0xff]
    %v1117 = vld [vmem:[#allocation7 + $0x178] sm:$0xff]
    %v1118 = vld [vmem:[#allocation7 + $0x180] sm:$0xff]
    %v1119 = vld [vmem:[#allocation7 + $0x188] sm:$0xff]
    %v1120 = vld [vmem:[#allocation7 + $0x190] sm:$0xff]
    %v1121 = vld [vmem:[#allocation7 + $0x198] sm:$0xff]
    %v1122 = vld [vmem:[#allocation7 + $0x1a0] sm:$0xff]
    %v1123 = vld [vmem:[#allocation7 + $0x1a8] sm:$0xff]
    %v1124 = vld [vmem:[#allocation7 + $0x1b0] sm:$0xff]
    %v1125 = vld [vmem:[#allocation7 + $0x1b8] sm:$0xff]
    %v1126 = vld [vmem:[#allocation7 + $0x1c0] sm:$0xff]
    %v1127 = vld [vmem:[#allocation7 + $0x1c8] sm:$0xff]
    %v1128 = vld [vmem:[#allocation7 + $0x1d0] sm:$0xff]
    %v1129 = vld [vmem:[#allocation7 + $0x1d8] sm:$0xff]
    %v1130 = vld [vmem:[#allocation7 + $0x1e0] sm:$0xff]
    %v1131 = vld [vmem:[#allocation7 + $0x1e8] sm:$0xff]
    %v1132 = vld [vmem:[#allocation7 + $0x1f0] sm:$0xff]
    %v1133 = vld [vmem:[#allocation7 + $0x1f8] sm:$0xff]
    %v1198 = vunpack.c.l.b16 %v1070
    %v1199 = vunpack.c.h.b16 %v1070
    %v1200 = vunpack.c.l.b16 %v1071
    %v1201 = vunpack.c.h.b16 %v1071
    %v1202 = vunpack.c.l.b16 %v1072
    %v1203 = vunpack.c.h.b16 %v1072
    %v1204 = vunpack.c.l.b16 %v1073
    %v1205 = vunpack.c.h.b16 %v1073
    %v1206 = vunpack.c.l.b16 %v1074
    %v1207 = vunpack.c.h.b16 %v1074
    %v1208 = vunpack.c.l.b16 %v1075
    %v1209 = vunpack.c.h.b16 %v1075
    %v1210 = vunpack.c.l.b16 %v1076
    %v1211 = vunpack.c.h.b16 %v1076
    %v1212 = vunpack.c.l.b16 %v1077
    %v1213 = vunpack.c.h.b16 %v1077
    %v1214 = vunpack.c.l.b16 %v1078
    %v1215 = vunpack.c.h.b16 %v1078
    %v1216 = vunpack.c.l.b16 %v1079
    %v1217 = vunpack.c.h.b16 %v1079
    %v1218 = vunpack.c.l.b16 %v1080
    %v1219 = vunpack.c.h.b16 %v1080
    %v1220 = vunpack.c.l.b16 %v1081
    %v1221 = vunpack.c.h.b16 %v1081
    %v1222 = vunpack.c.l.b16 %v1082
    %v1223 = vunpack.c.h.b16 %v1082
    %v1224 = vunpack.c.l.b16 %v1083
    %v1225 = vunpack.c.h.b16 %v1083
    %v1226 = vunpack.c.l.b16 %v1084
    %v1227 = vunpack.c.h.b16 %v1084
    %v1228 = vunpack.c.l.b16 %v1085
    %v1229 = vunpack.c.h.b16 %v1085
    %v1230 = vunpack.c.l.b16 %v1086
    %v1231 = vunpack.c.h.b16 %v1086
    %v1232 = vunpack.c.l.b16 %v1087
    %v1233 = vunpack.c.h.b16 %v1087
    %v1234 = vunpack.c.l.b16 %v1088
    %v1235 = vunpack.c.h.b16 %v1088
    %v1236 = vunpack.c.l.b16 %v1089
    %v1237 = vunpack.c.h.b16 %v1089
    %v1238 = vunpack.c.l.b16 %v1090
    %v1239 = vunpack.c.h.b16 %v1090
    %v1240 = vunpack.c.l.b16 %v1091
    %v1241 = vunpack.c.h.b16 %v1091
    %v1242 = vunpack.c.l.b16 %v1092
    %v1243 = vunpack.c.h.b16 %v1092
    %v1244 = vunpack.c.l.b16 %v1093
    %v1245 = vunpack.c.h.b16 %v1093
    %v1246 = vunpack.c.l.b16 %v1094
    %v1247 = vunpack.c.h.b16 %v1094
    %v1248 = vunpack.c.l.b16 %v1095
    %v1249 = vunpack.c.h.b16 %v1095
    %v1250 = vunpack.c.l.b16 %v1096
    %v1251 = vunpack.c.h.b16 %v1096
    %v1252 = vunpack.c.l.b16 %v1097
    %v1253 = vunpack.c.h.b16 %v1097
    %v1254 = vunpack.c.l.b16 %v1098
    %v1255 = vunpack.c.h.b16 %v1098
    %v1256 = vunpack.c.l.b16 %v1099
    %v1257 = vunpack.c.h.b16 %v1099
    %v1258 = vunpack.c.l.b16 %v1100
    %v1259 = vunpack.c.h.b16 %v1100
    %v1260 = vunpack.c.l.b16 %v1101
    %v1261 = vunpack.c.h.b16 %v1101
    %v1262 = vunpack.c.l.b16 %v1102
    %v1263 = vunpack.c.h.b16 %v1102
    %v1264 = vunpack.c.l.b16 %v1103
    %v1265 = vunpack.c.h.b16 %v1103
    %v1266 = vunpack.c.l.b16 %v1104
    %v1267 = vunpack.c.h.b16 %v1104
    %v1268 = vunpack.c.l.b16 %v1105
    %v1269 = vunpack.c.h.b16 %v1105
    %v1270 = vunpack.c.l.b16 %v1106
    %v1271 = vunpack.c.h.b16 %v1106
    %v1272 = vunpack.c.l.b16 %v1107
    %v1273 = vunpack.c.h.b16 %v1107
    %v1274 = vunpack.c.l.b16 %v1108
    %v1275 = vunpack.c.h.b16 %v1108
    %v1276 = vunpack.c.l.b16 %v1109
    %v1277 = vunpack.c.h.b16 %v1109
    %v1278 = vunpack.c.l.b16 %v1110
    %v1279 = vunpack.c.h.b16 %v1110
    %v1280 = vunpack.c.l.b16 %v1111
    %v1281 = vunpack.c.h.b16 %v1111
    %v1282 = vunpack.c.l.b16 %v1112
    %v1283 = vunpack.c.h.b16 %v1112
    %v1284 = vunpack.c.l.b16 %v1113
    %v1285 = vunpack.c.h.b16 %v1113
    %v1286 = vunpack.c.l.b16 %v1114
    %v1287 = vunpack.c.h.b16 %v1114
    %v1288 = vunpack.c.l.b16 %v1115
    %v1289 = vunpack.c.h.b16 %v1115
    %v1290 = vunpack.c.l.b16 %v1116
    %v1291 = vunpack.c.h.b16 %v1116
    %v1292 = vunpack.c.l.b16 %v1117
    %v1293 = vunpack.c.h.b16 %v1117
    %v1294 = vunpack.c.l.b16 %v1118
    %v1295 = vunpack.c.h.b16 %v1118
    %v1296 = vunpack.c.l.b16 %v1119
    %v1297 = vunpack.c.h.b16 %v1119
    %v1298 = vunpack.c.l.b16 %v1120
    %v1299 = vunpack.c.h.b16 %v1120
    %v1300 = vunpack.c.l.b16 %v1121
    %v1301 = vunpack.c.h.b16 %v1121
    %v1302 = vunpack.c.l.b16 %v1122
    %v1303 = vunpack.c.h.b16 %v1122
    %v1304 = vunpack.c.l.b16 %v1123
    %v1305 = vunpack.c.h.b16 %v1123
    %v1306 = vunpack.c.l.b16 %v1124
    %v1307 = vunpack.c.h.b16 %v1124
    %v1308 = vunpack.c.l.b16 %v1125
    %v1309 = vunpack.c.h.b16 %v1125
    %v1310 = vunpack.c.l.b16 %v1126
    %v1311 = vunpack.c.h.b16 %v1126
    %v1312 = vunpack.c.l.b16 %v1127
    %v1313 = vunpack.c.h.b16 %v1127
    %v1314 = vunpack.c.l.b16 %v1128
    %v1315 = vunpack.c.h.b16 %v1128
    %v1316 = vunpack.c.l.b16 %v1129
    %v1317 = vunpack.c.h.b16 %v1129
    %v1318 = vunpack.c.l.b16 %v1130
    %v1319 = vunpack.c.h.b16 %v1130
    %v1320 = vunpack.c.l.b16 %v1131
    %v1321 = vunpack.c.h.b16 %v1131
    %v1322 = vunpack.c.l.b16 %v1132
    %v1323 = vunpack.c.h.b16 %v1132
    %v1324 = vunpack.c.l.b16 %v1133
    %v1325 = vunpack.c.h.b16 %v1133
    %v1326 = vpack.c.b16 %v1200, %v1198
    %v1327 = vpack.c.b16 %v1201, %v1199
    %v1328 = vpack.c.b16 %v1204, %v1202
    %v1329 = vpack.c.b16 %v1205, %v1203
    %v1330 = vpack.c.b16 %v1208, %v1206
    %v1331 = vpack.c.b16 %v1209, %v1207
    %v1332 = vpack.c.b16 %v1212, %v1210
    %v1333 = vpack.c.b16 %v1213, %v1211
    %v1334 = vpack.c.b16 %v1216, %v1214
    %v1335 = vpack.c.b16 %v1217, %v1215
    %v1336 = vpack.c.b16 %v1220, %v1218
    %v1337 = vpack.c.b16 %v1221, %v1219
    %v1338 = vpack.c.b16 %v1224, %v1222
    %v1339 = vpack.c.b16 %v1225, %v1223
    %v1340 = vpack.c.b16 %v1228, %v1226
    %v1341 = vpack.c.b16 %v1229, %v1227
    %v1342 = vpack.c.b16 %v1232, %v1230
    %v1343 = vpack.c.b16 %v1233, %v1231
    %v1344 = vpack.c.b16 %v1236, %v1234
    %v1345 = vpack.c.b16 %v1237, %v1235
    %v1346 = vpack.c.b16 %v1240, %v1238
    %v1347 = vpack.c.b16 %v1241, %v1239
    %v1348 = vpack.c.b16 %v1244, %v1242
    %v1349 = vpack.c.b16 %v1245, %v1243
    %v1350 = vpack.c.b16 %v1248, %v1246
    %v1351 = vpack.c.b16 %v1249, %v1247
    %v1352 = vpack.c.b16 %v1252, %v1250
    %v1353 = vpack.c.b16 %v1253, %v1251
    %v1354 = vpack.c.b16 %v1256, %v1254
    %v1355 = vpack.c.b16 %v1257, %v1255
    %v1356 = vpack.c.b16 %v1260, %v1258
    %v1357 = vpack.c.b16 %v1261, %v1259
    %v1358 = vpack.c.b16 %v1264, %v1262
    %v1359 = vpack.c.b16 %v1265, %v1263
    %v1360 = vpack.c.b16 %v1268, %v1266
    %v1361 = vpack.c.b16 %v1269, %v1267
    %v1362 = vpack.c.b16 %v1272, %v1270
    %v1363 = vpack.c.b16 %v1273, %v1271
    %v1364 = vpack.c.b16 %v1276, %v1274
    %v1365 = vpack.c.b16 %v1277, %v1275
    %v1366 = vpack.c.b16 %v1280, %v1278
    %v1367 = vpack.c.b16 %v1281, %v1279
    %v1368 = vpack.c.b16 %v1284, %v1282
    %v1369 = vpack.c.b16 %v1285, %v1283
    %v1370 = vpack.c.b16 %v1288, %v1286
    %v1371 = vpack.c.b16 %v1289, %v1287
    %v1372 = vpack.c.b16 %v1292, %v1290
    %v1373 = vpack.c.b16 %v1293, %v1291
    %v1374 = vpack.c.b16 %v1296, %v1294
    %v1375 = vpack.c.b16 %v1297, %v1295
    %v1376 = vpack.c.b16 %v1300, %v1298
    %v1377 = vpack.c.b16 %v1301, %v1299
    %v1378 = vpack.c.b16 %v1304, %v1302
    %v1379 = vpack.c.b16 %v1305, %v1303
    %v1380 = vpack.c.b16 %v1308, %v1306
    %v1381 = vpack.c.b16 %v1309, %v1307
    %v1382 = vpack.c.b16 %v1312, %v1310
    %v1383 = vpack.c.b16 %v1313, %v1311
    %v1384 = vpack.c.b16 %v1316, %v1314
    %v1385 = vpack.c.b16 %v1317, %v1315
    %v1386 = vpack.c.b16 %v1320, %v1318
    %v1387 = vpack.c.b16 %v1321, %v1319
    %v1388 = vpack.c.b16 %v1324, %v1322
    %v1389 = vpack.c.b16 %v1325, %v1323
    %1454 = vmatprep.subr.bf16.mxu0 %v1341
    %1455 = vmatpush1.bf16.msra.mxu0 %v1340
    %1456 = vmatprep.subr.bf16.mxu0 %v1339
    %1457 = vmatpush1.bf16.msra.mxu0 %v1338
    %1458 = vmatprep.subr.bf16.mxu0 %v1337
    %1459 = vmatpush1.bf16.msra.mxu0 %v1336
    %1460 = vmatprep.subr.bf16.mxu0 %v1335
    %1461 = vmatpush1.bf16.msra.mxu0 %v1334
    %1462 = vmatprep.subr.bf16.mxu0 %v1333
    %1463 = vmatpush1.bf16.msra.mxu0 %v1332
    %1464 = vmatprep.subr.bf16.mxu0 %v1331
    %1465 = vmatpush1.bf16.msra.mxu0 %v1330
    %1466 = vmatprep.subr.bf16.mxu0 %v1329
    %1467 = vmatpush1.bf16.msra.mxu0 %v1328
    %1468 = vmatprep.subr.bf16.mxu0 %v1327
    %1469 = vmatpush1.bf16.msra.mxu0 %v1326
    %1470 = vmatprep.subr.bf16.mxu0 %v1357
    %1471 = vmatpush2.bf16.msra.mxu0 %v1356
    %1472 = vmatprep.subr.bf16.mxu0 %v1355
    %1473 = vmatpush2.bf16.msra.mxu0 %v1354
    %1474 = vmatprep.subr.bf16.mxu0 %v1353
    %1475 = vmatpush2.bf16.msra.mxu0 %v1352
    %1476 = vmatprep.subr.bf16.mxu0 %v1351
    %1477 = vmatpush2.bf16.msra.mxu0 %v1350
    %1478 = vmatprep.subr.bf16.mxu0 %v1349
    %1479 = vmatpush2.bf16.msra.mxu0 %v1348
    %1480 = vmatprep.subr.bf16.mxu0 %v1347
    %1481 = vmatpush2.bf16.msra.mxu0 %v1346
    %1482 = vmatprep.subr.bf16.mxu0 %v1345
    %1483 = vmatpush2.bf16.msra.mxu0 %v1344
    %1484 = vmatprep.subr.bf16.mxu0 %v1343
    %1485 = vmatpush2.bf16.msra.mxu0 %v1342
    %1486 = vmatprep.mubr.bf16.mxu0 %v1067
    %1487 = vmatmul.mubr.bf16.gmra.mxu0 %v1066
    %v1488 = vpop.f32.mrf.mxu0
    %v1489 = vadd.f32 %v327, %v1488
    %v1490 = vpop.f32.mrf.mxu0
    %v1491 = vadd.f32 %v331, %v1490
    %v1492 = vpop.f32.mrf.mxu0
    %v1493 = vpop.f32.mrf.mxu0
    %1494 = vdwg.mxu0
    %1495 = vmatprep.subr.bf16.mxu0 %v1373
    %1496 = vmatpush1.bf16.msra.mxu0 %v1372
    %1497 = vmatprep.subr.bf16.mxu0 %v1371
    %1498 = vmatpush1.bf16.msra.mxu0 %v1370
    %1499 = vmatprep.subr.bf16.mxu0 %v1369
    %1500 = vmatpush1.bf16.msra.mxu0 %v1368
    %1501 = vmatprep.subr.bf16.mxu0 %v1367
    %1502 = vmatpush1.bf16.msra.mxu0 %v1366
    %1503 = vmatprep.subr.bf16.mxu0 %v1365
    %1504 = vmatpush1.bf16.msra.mxu0 %v1364
    %1505 = vmatprep.subr.bf16.mxu0 %v1363
    %1506 = vmatpush1.bf16.msra.mxu0 %v1362
    %1507 = vmatprep.subr.bf16.mxu0 %v1361
    %1508 = vmatpush1.bf16.msra.mxu0 %v1360
    %1509 = vmatprep.subr.bf16.mxu0 %v1359
    %1510 = vmatpush1.bf16.msra.mxu0 %v1358
    %1511 = vmatprep.subr.bf16.mxu0 %v1389
    %1512 = vmatpush2.bf16.msra.mxu0 %v1388
    %1513 = vmatprep.subr.bf16.mxu0 %v1387
    %1514 = vmatpush2.bf16.msra.mxu0 %v1386
    %1515 = vmatprep.subr.bf16.mxu0 %v1385
    %1516 = vmatpush2.bf16.msra.mxu0 %v1384
    %1517 = vmatprep.subr.bf16.mxu0 %v1383
    %1518 = vmatpush2.bf16.msra.mxu0 %v1382
    %1519 = vmatprep.subr.bf16.mxu0 %v1381
    %1520 = vmatpush2.bf16.msra.mxu0 %v1380
    %1521 = vmatprep.subr.bf16.mxu0 %v1379
    %1522 = vmatpush2.bf16.msra.mxu0 %v1378
    %1523 = vmatprep.subr.bf16.mxu0 %v1377
    %1524 = vmatpush2.bf16.msra.mxu0 %v1376
    %1525 = vmatprep.subr.bf16.mxu0 %v1375
    %1526 = vmatpush2.bf16.msra.mxu0 %v1374
    %1527 = vmatprep.mubr.bf16.mxu0 %v1069
    %1528 = vmatmul.mubr.bf16.gmra.mxu0 %v1068
    %v1529 = vpop.f32.mrf.mxu0
    %v1530 = vadd.f32 %v1489, %v1529
    %v1531 = vpop.f32.mrf.mxu0
    %v1532 = vadd.f32 %v1491, %v1531
    %v1533 = vpop.f32.mrf.mxu0
    %v1534 = vpop.f32.mrf.mxu0
    %1535 = vdwg.mxu0
    %v1536 = vmax.f32 %v1530, 0.0
    %v1537 = vmax.f32 %v1532, 0.0
    %v1538 = vpack.c.bf16 %v1536, %v1536
    %v1539 = vpack.c.bf16 %v1537, %v1537
    %v1540 = vld [vmem:[#allocation8] sm:$0xf]
    %v1541 = vld [vmem:[#allocation8 + $0x4] sm:$0xf]
    %v1542 = vld [vmem:[#allocation8 + $0x8] sm:$0xf]
    %v1543 = vld [vmem:[#allocation8 + $0xc] sm:$0xf]
    %v1544 = vld [vmem:[#allocation8 + $0x10] sm:$0xf]
    %v1545 = vld [vmem:[#allocation8 + $0x14] sm:$0xf]
    %v1546 = vld [vmem:[#allocation8 + $0x18] sm:$0xf]
    %v1547 = vld [vmem:[#allocation8 + $0x1c] sm:$0xf]
    %v1548 = vld [vmem:[#allocation8 + $0x20] sm:$0xf]
    %v1549 = vld [vmem:[#allocation8 + $0x24] sm:$0xf]
    %v1550 = vld [vmem:[#allocation8 + $0x28] sm:$0xf]
    %v1551 = vld [vmem:[#allocation8 + $0x2c] sm:$0xf]
    %v1552 = vld [vmem:[#allocation8 + $0x30] sm:$0xf]
    %v1553 = vld [vmem:[#allocation8 + $0x34] sm:$0xf]
    %v1554 = vld [vmem:[#allocation8 + $0x38] sm:$0xf]
    %v1555 = vld [vmem:[#allocation8 + $0x3c] sm:$0xf]
    %v1556 = vld [vmem:[#allocation8 + $0x40] sm:$0xf]
    %v1557 = vld [vmem:[#allocation8 + $0x44] sm:$0xf]
    %v1558 = vld [vmem:[#allocation8 + $0x48] sm:$0xf]
    %v1559 = vld [vmem:[#allocation8 + $0x4c] sm:$0xf]
    %v1560 = vld [vmem:[#allocation8 + $0x50] sm:$0xf]
    %v1561 = vld [vmem:[#allocation8 + $0x54] sm:$0xf]
    %v1562 = vld [vmem:[#allocation8 + $0x58] sm:$0xf]
    %v1563 = vld [vmem:[#allocation8 + $0x5c] sm:$0xf]
    %v1564 = vld [vmem:[#allocation8 + $0x60] sm:$0xf]
    %v1565 = vld [vmem:[#allocation8 + $0x64] sm:$0xf]
    %v1566 = vld [vmem:[#allocation8 + $0x68] sm:$0xf]
    %v1567 = vld [vmem:[#allocation8 + $0x6c] sm:$0xf]
    %v1568 = vld [vmem:[#allocation8 + $0x70] sm:$0xf]
    %v1569 = vld [vmem:[#allocation8 + $0x74] sm:$0xf]
    %v1570 = vld [vmem:[#allocation8 + $0x78] sm:$0xf]
    %v1571 = vld [vmem:[#allocation8 + $0x7c] sm:$0xf]
    %v1604 = vunpack.c.l.b16 %v1540
    %v1605 = vunpack.c.l.b16 %v1541
    %v1606 = vunpack.c.l.b16 %v1542
    %v1607 = vunpack.c.l.b16 %v1543
    %v1608 = vunpack.c.l.b16 %v1544
    %v1609 = vunpack.c.l.b16 %v1545
    %v1610 = vunpack.c.l.b16 %v1546
    %v1611 = vunpack.c.l.b16 %v1547
    %v1612 = vunpack.c.l.b16 %v1548
    %v1613 = vunpack.c.l.b16 %v1549
    %v1614 = vunpack.c.l.b16 %v1550
    %v1615 = vunpack.c.l.b16 %v1551
    %v1616 = vunpack.c.l.b16 %v1552
    %v1617 = vunpack.c.l.b16 %v1553
    %v1618 = vunpack.c.l.b16 %v1554
    %v1619 = vunpack.c.l.b16 %v1555
    %v1620 = vunpack.c.l.b16 %v1556
    %v1621 = vunpack.c.l.b16 %v1557
    %v1622 = vunpack.c.l.b16 %v1558
    %v1623 = vunpack.c.l.b16 %v1559
    %v1624 = vunpack.c.l.b16 %v1560
    %v1625 = vunpack.c.l.b16 %v1561
    %v1626 = vunpack.c.l.b16 %v1562
    %v1627 = vunpack.c.l.b16 %v1563
    %v1628 = vunpack.c.l.b16 %v1564
    %v1629 = vunpack.c.l.b16 %v1565
    %v1630 = vunpack.c.l.b16 %v1566
    %v1631 = vunpack.c.l.b16 %v1567
    %v1632 = vunpack.c.l.b16 %v1568
    %v1633 = vunpack.c.l.b16 %v1569
    %v1634 = vunpack.c.l.b16 %v1570
    %v1635 = vunpack.c.l.b16 %v1571
    %v1636 = vpack.c.b16 %v1605, %v1604
    %v1637 = vpack.c.b16 %v1607, %v1606
    %v1638 = vpack.c.b16 %v1609, %v1608
    %v1639 = vpack.c.b16 %v1611, %v1610
    %v1640 = vpack.c.b16 %v1613, %v1612
    %v1641 = vpack.c.b16 %v1615, %v1614
    %v1642 = vpack.c.b16 %v1617, %v1616
    %v1643 = vpack.c.b16 %v1619, %v1618
    %v1644 = vpack.c.b16 %v1621, %v1620
    %v1645 = vpack.c.b16 %v1623, %v1622
    %v1646 = vpack.c.b16 %v1625, %v1624
    %v1647 = vpack.c.b16 %v1627, %v1626
    %v1648 = vpack.c.b16 %v1629, %v1628
    %v1649 = vpack.c.b16 %v1631, %v1630
    %v1650 = vpack.c.b16 %v1633, %v1632
    %v1651 = vpack.c.b16 %v1635, %v1634
    %1668 = vmatprep.subr.bf16.mxu0 0
    %1669 = vmatpush1.bf16.msra.mxu0 %v1643
    %1670 = vmatprep.subr.bf16.mxu0 0
    %1671 = vmatpush1.bf16.msra.mxu0 %v1642
    %1672 = vmatprep.subr.bf16.mxu0 0
    %1673 = vmatpush1.bf16.msra.mxu0 %v1641
    %1674 = vmatprep.subr.bf16.mxu0 0
    %1675 = vmatpush1.bf16.msra.mxu0 %v1640
    %1676 = vmatprep.subr.bf16.mxu0 0
    %1677 = vmatpush1.bf16.msra.mxu0 %v1639
    %1678 = vmatprep.subr.bf16.mxu0 0
    %1679 = vmatpush1.bf16.msra.mxu0 %v1638
    %1680 = vmatprep.subr.bf16.mxu0 0
    %1681 = vmatpush1.bf16.msra.mxu0 %v1637
    %1682 = vmatprep.subr.bf16.mxu0 0
    %1683 = vmatpush1.bf16.msra.mxu0 %v1636
    %1684 = vmatprep.subr.bf16.mxu0 0
    %1685 = vmatpush2.bf16.msra.mxu0 %v1651
    %1686 = vmatprep.subr.bf16.mxu0 0
    %1687 = vmatpush2.bf16.msra.mxu0 %v1650
    %1688 = vmatprep.subr.bf16.mxu0 0
    %1689 = vmatpush2.bf16.msra.mxu0 %v1649
    %1690 = vmatprep.subr.bf16.mxu0 0
    %1691 = vmatpush2.bf16.msra.mxu0 %v1648
    %1692 = vmatprep.subr.bf16.mxu0 0
    %1693 = vmatpush2.bf16.msra.mxu0 %v1647
    %1694 = vmatprep.subr.bf16.mxu0 0
    %1695 = vmatpush2.bf16.msra.mxu0 %v1646
    %1696 = vmatprep.subr.bf16.mxu0 0
    %1697 = vmatpush2.bf16.msra.mxu0 %v1645
    %1698 = vmatprep.subr.bf16.mxu0 0
    %1699 = vmatpush2.bf16.msra.mxu0 %v1644
    %1700 = vmatprep.mubr.bf16.mxu0 %v1539
    %1701 = vmatmul.mubr.bf16.gmra.mxu0 %v1538
    %v1702 = vpop.f32.mrf.mxu0
    %v1703 = vadd.f32 %v776, %v1702
    %v1704 = vpop.f32.mrf.mxu0
    %v1705 = vpop.f32.mrf.mxu0
    %v1706 = vpop.f32.mrf.mxu0
    %1707 = vdwg.mxu0
    %v1708 = vmax.f32 %v1703, 0.0
    %v1709 = vmul.f32 %v1708, %v919
    %1710 = vadd.xlane.f32.xlu0 %v1709
    %v1711 = vpop.xlane.xlu0 %1710
    %v1712 = vadd.f32 %v1711, %v924
    %1713 = vst.msk [vmem:[%s9 + $0x8] sm:$0xff] %vm926, %v1712
    // Predicated region
    $region54: #{tpu_custom_call.1} parent=1 // pred_check
      _
    $region55: #{tpu_custom_call.1} parent=1 // pred_check_branch
      %1715 = sbr.rel (0) target = $region57
    $region56: #{tpu_custom_call.1} parent=1 // pred_region
      _
    $region57: #{tpu_custom_call.1} parent=1 // pred_fallthru
      _
    // Predicated region
    $region58: #{tpu_custom_call.1} parent=1 // pred_check
      _
    $region59: #{tpu_custom_call.1} parent=1 // pred_check_branch
      %1717 = sbr.rel (0) target = $region61
    $region60: #{tpu_custom_call.1} parent=1 // pred_region
      _
    $region61: #{tpu_custom_call.1} parent=1 // pred_fallthru
      _
    %1718 = vsyncpa [#allocation4], 1
    %1719 = vsyncpa [#allocation6], 1
    %1720 = vsyncpa [#allocation9], 1

</llo_original>
